<compile_context>
chip_gen: v5e
topology: v5e:2x2
jax: 0.10.0
libtpu: 0.0.40
codegen_flags: <defaults>
</compile_context>

<pallas_src>
import functools

import jax
import jax.numpy as jnp
from jax.experimental import pallas as pl
from jax.experimental.pallas import tpu as pltpu


# ----------------------------- Pallas kernel -------------------------------

def _bnn_fused_kernel(*refs, n_layer_total, sblk):
    """One grid step == one block of `sblk` posterior samples through the full net.

    Ref layout (all tensors in transposed, lane-dense orientation):
      refs[0]              : x^T           (d_in, n_obs)          shared
      refs[1 + 6*l + 0..5] : layer l:
          w_mu^T   (d_out, d_in)
          w_sig^T  (d_out, d_in)   -- softplus(w_rho)^T, precomputed outside
          b_mu^T   (d_out, 1)
          b_sig^T  (d_out, 1)
          w_eps^T  (sblk, d_out, d_in)   -- this block of samples
          b_eps^T  (sblk, d_out, 1)
      refs[-1]             : output block  (1, sblk, n_obs)       lane-dense
    """
    x_ref = refs[0]
    o_ref = refs[-1]
    layer_refs = refs[1:-1]

    xT = x_ref[...]                                     # (d_in, n_obs)

    rows = []
    for s in range(sblk):                               # static unroll, sblk <= 8
        hT = xT
        for l in range(n_layer_total):
            w_muT, w_sigT, b_muT, b_sigT, w_epsT, b_epsT = \
                layer_refs[6 * l:6 * (l + 1)]
            # reparameterized weight / bias sample (sigma hoisted, no softplus here)
            wT = w_muT[...] + w_sigT[...] * w_epsT[s]   # (d_out, d_in)
            bT = b_muT[...] + b_sigT[...] * b_epsT[s]   # (d_out, 1)
            hT = jnp.dot(wT, hT, preferred_element_type=jnp.float32) + bT
            if l < n_layer_total - 1:                   # ReLU on all but last layer
                hT = jnp.maximum(hT, 0.0)
        rows.append(hT)                                 # (1, n_obs) since d_out == 1

    out = rows[0] if sblk == 1 else jnp.concatenate(rows, axis=0)   # (sblk, n_obs)
    o_ref[0] = out.astype(o_ref.dtype)


# ------------------------------ fused forward -------------------------------

def _choose_sample_block(n_samp, max_blk=8):
    """Largest divisor of n_samp (<= max_blk) that still leaves >= 2 grid steps
    (so v7x's two TensorCores both get work). Always divides n_samp."""
    for s in range(min(n_samp, max_blk), 0, -1):
        if n_samp % s == 0 and n_samp // s >= 2:
            return s
    return min(n_samp, max_blk)        # only reached when n_samp == 1


def _sample_eps(key, params, n_samp):
    """n_samp standard-normal eps draws for every layer's W and b."""
    eps = []
    for (w_mu, _, b_mu, _) in params:
        key, k_w, k_b = jax.random.split(key, 3)
        eps.append((
            jax.random.normal(k_w, (n_samp,) + w_mu.shape, jnp.float32),
            jax.random.normal(k_b, (n_samp,) + b_mu.shape, jnp.float32),
        ))
    return tuple(eps)


@functools.partial(jax.jit, static_argnames=("n_samp", "sblk"))
def _bnn_forward(x, params, key, *, n_samp, sblk):
    """x: (n_obs, dim_in) -> f_pred: (n_obs, n_samp, 1). Whole forward is jitted."""
    n_obs = x.shape[0]
    n_layer_total = len(params)
    n_blk = n_samp // sblk
    assert n_blk * sblk == n_samp

    eps = _sample_eps(key, params, n_samp)

    xT = x.T                                             # (d_in, n_obs): n_obs on lanes
    args = [xT]
    in_specs = [pl.BlockSpec(xT.shape, lambda i: (0, 0))]

    for (w_mu, w_rho, b_mu, b_rho), (w_eps, b_eps) in zip(params, eps):
        d_in, d_out = w_mu.shape
        # hoist softplus: one pass per forward instead of one per sample
        w_sig = jax.nn.softplus(w_rho)
        b_sig = jax.nn.softplus(b_rho)
        args += [
            w_mu.T, w_sig.T,                             # (d_out, d_in)
            b_mu.T, b_sig.T,                             # (d_out, 1)
            jnp.transpose(w_eps, (0, 2, 1)),             # (n_samp, d_out, d_in)
            jnp.transpose(b_eps, (0, 2, 1)),             # (n_samp, d_out, 1)
        ]
        in_specs += [
            pl.BlockSpec((d_out, d_in), lambda i: (0, 0)),
            pl.BlockSpec((d_out, d_in), lambda i: (0, 0)),
            pl.BlockSpec((d_out, 1), lambda i: (0, 0)),
            pl.BlockSpec((d_out, 1), lambda i: (0, 0)),
            pl.BlockSpec((sblk, d_out, d_in), lambda i: (i, 0, 0)),   # per sample-block
            pl.BlockSpec((sblk, d_out, 1), lambda i: (i, 0, 0)),      # per sample-block
        ]

    kernel = functools.partial(_bnn_fused_kernel,
                               n_layer_total=n_layer_total, sblk=sblk)
    out = pl.pallas_call(
        kernel,
        out_shape=jax.ShapeDtypeStruct((n_blk, sblk, n_obs), jnp.float32),
        grid=(n_blk,),
        in_specs=in_specs,
        out_specs=pl.BlockSpec((1, sblk, n_obs), lambda i: (i, 0, 0)),
        compiler_params=pltpu.CompilerParams(
            dimension_semantics=("parallel",)),
    )(*args)

    # (n_blk, sblk, n_obs) -> (n_samp, n_obs) -> (n_obs, n_samp, 1)
    return jnp.transpose(out.reshape(n_samp, n_obs), (1, 0))[:, :, None]


# ------------------------------ BNN wrapper --------------------------------

class BNNPallas:
    """Mirror of BNN.__init__ layer stack: [in->h] + [h->h]*(n_layers-1) + [h->1]."""

    def __init__(self, dim_in, dim_hidden=50, n_layers=1, noise_scale=1.0, key=None):
        if key is None:
            key = jax.random.PRNGKey(0)
        self.dim_in = dim_in
        self.dim_hidden = dim_hidden
        self.n_layers = n_layers
        self.noise_scale = noise_scale

        dims = ([(dim_in, dim_hidden)]
                + [(dim_hidden, dim_hidden) for _ in range(n_layers - 1)]
                + [(dim_hidden, 1)])

        params = []
        for (d_in, d_out) in dims:
            key, k_w, k_b = jax.random.split(key, 3)
            w_mu = jax.random.normal(k_w, (d_in, d_out), jnp.float32) / jnp.sqrt(d_in)
            w_rho = jnp.full((d_in, d_out), -3.0, jnp.float32)   # softplus(-3) ~ 0.049
            b_mu = 0.1 * jax.random.normal(k_b, (1, d_out), jnp.float32)
            b_rho = jnp.full((1, d_out), -3.0, jnp.float32)
            params.append((w_mu, w_rho, b_mu, b_rho))
        self.params = tuple(params)

    def forward(self, x, n_samp=1, key=None):
        """x: (n_obs, dim_in) -> f_pred: (n_obs, n_samp, 1)."""
        if key is None:
            key = jax.random.PRNGKey(1)
        sblk = _choose_sample_block(n_samp)
        return _bnn_forward(x, self.params, key, n_samp=n_samp, sblk=sblk)

    # pure-JAX reference for correctness checking
    def forward_ref(self, x, n_samp=1, key=None):
        if key is None:
            key = jax.random.PRNGKey(1)
        eps = _sample_eps(key, self.params, n_samp)
        h = jnp.broadcast_to(x[None, :, :], (n_samp,) + x.shape)
        for l, ((w_mu, w_rho, b_mu, b_rho), (w_eps, b_eps)) in enumerate(
                zip(self.params, eps)):
            w = w_mu[None] + jax.nn.softplus(w_rho)[None] * w_eps
            b = b_mu[None] + jax.nn.softplus(b_rho)[None] * b_eps
            h = jnp.einsum('snd,sdo->sno', h, w) + b
            if l < self.n_layers:
                h = jnp.maximum(h, 0.0)
        return jnp.transpose(h, (1, 0, 2))


# --------------------------------- main ------------------------------------

if __name__ == "__main__":
    key = jax.random.PRNGKey(0)
    k_param, k_data, k_eps = jax.random.split(key, 3)

    n_obs, dim_in, dim_hidden, n_layers, n_samp = 8, 4, 32, 2, 4

    model = BNNPallas(dim_in=dim_in, dim_hidden=dim_hidden,
                      n_layers=n_layers, key=k_param)

    x = jax.random.normal(k_data, (n_obs, dim_in), jnp.float32)

    f_pred = model.forward(x, n_samp=n_samp, key=k_eps)
    f_pred = jax.block_until_ready(f_pred)

    f_ref = model.forward_ref(x, n_samp=n_samp, key=k_eps)
    assert f_pred.shape == (n_obs, n_samp, 1)
    assert jnp.allclose(f_pred, f_ref, atol=1e-4, rtol=1e-4), "mismatch vs reference"

    print("KERNEL_OK")
</pallas_src>

<mosaic_0001>
module attributes {stable_mosaic.version = 11 : i64} {
  func.func @_bnn_fused_kernel(%arg0: i32, %arg1: memref<4x8xf32, #tpu.memory_space<vmem>>, %arg2: memref<32x4xf32, #tpu.memory_space<vmem>>, %arg3: memref<32x4xf32, #tpu.memory_space<vmem>>, %arg4: memref<32x1xf32, #tpu.memory_space<vmem>>, %arg5: memref<32x1xf32, #tpu.memory_space<vmem>>, %arg6: memref<2x32x4xf32, #tpu.memory_space<vmem>>, %arg7: memref<2x32x1xf32, #tpu.memory_space<vmem>>, %arg8: memref<32x32xf32, #tpu.memory_space<vmem>>, %arg9: memref<32x32xf32, #tpu.memory_space<vmem>>, %arg10: memref<32x1xf32, #tpu.memory_space<vmem>>, %arg11: memref<32x1xf32, #tpu.memory_space<vmem>>, %arg12: memref<2x32x32xf32, #tpu.memory_space<vmem>>, %arg13: memref<2x32x1xf32, #tpu.memory_space<vmem>>, %arg14: memref<1x32xf32, #tpu.memory_space<vmem>>, %arg15: memref<1x32xf32, #tpu.memory_space<vmem>>, %arg16: memref<1x1xf32, #tpu.memory_space<vmem>>, %arg17: memref<1x1xf32, #tpu.memory_space<vmem>>, %arg18: memref<2x1x32xf32, #tpu.memory_space<vmem>>, %arg19: memref<2x1x1xf32, #tpu.memory_space<vmem>>, %arg20: memref<1x2x8xf32, #tpu.memory_space<vmem>>) attributes {dimension_semantics = [#tpu.dimension_semantics<parallel>], iteration_bounds = array<i64: 2>, scalar_prefetch = 0 : i64, scratch_operands = 0 : i64, tpu.core_type = #tpu.core_type<tc>, window_params = [{pipeline_mode = #tpu.pipeline_mode<synchronous>, transform_indices = @transform_0, window_bounds = array<i64: 4, 8>}, {pipeline_mode = #tpu.pipeline_mode<synchronous>, transform_indices = @transform_1, window_bounds = array<i64: 32, 4>}, {pipeline_mode = #tpu.pipeline_mode<synchronous>, transform_indices = @transform_2, window_bounds = array<i64: 32, 4>}, {pipeline_mode = #tpu.pipeline_mode<synchronous>, transform_indices = @transform_3, window_bounds = array<i64: 32, 1>}, {pipeline_mode = #tpu.pipeline_mode<synchronous>, transform_indices = @transform_4, window_bounds = array<i64: 32, 1>}, {transform_indices = @transform_5, window_bounds = array<i64: 2, 32, 4>}, {transform_indices = @transform_6, window_bounds = array<i64: 2, 32, 1>}, {pipeline_mode = #tpu.pipeline_mode<synchronous>, transform_indices = @transform_7, window_bounds = array<i64: 32, 32>}, {pipeline_mode = #tpu.pipeline_mode<synchronous>, transform_indices = @transform_8, window_bounds = array<i64: 32, 32>}, {pipeline_mode = #tpu.pipeline_mode<synchronous>, transform_indices = @transform_9, window_bounds = array<i64: 32, 1>}, {pipeline_mode = #tpu.pipeline_mode<synchronous>, transform_indices = @transform_10, window_bounds = array<i64: 32, 1>}, {transform_indices = @transform_11, window_bounds = array<i64: 2, 32, 32>}, {transform_indices = @transform_12, window_bounds = array<i64: 2, 32, 1>}, {pipeline_mode = #tpu.pipeline_mode<synchronous>, transform_indices = @transform_13, window_bounds = array<i64: 1, 32>}, {pipeline_mode = #tpu.pipeline_mode<synchronous>, transform_indices = @transform_14, window_bounds = array<i64: 1, 32>}, {pipeline_mode = #tpu.pipeline_mode<synchronous>, transform_indices = @transform_15, window_bounds = array<i64: 1, 1>}, {pipeline_mode = #tpu.pipeline_mode<synchronous>, transform_indices = @transform_16, window_bounds = array<i64: 1, 1>}, {transform_indices = @transform_17, window_bounds = array<i64: 2, 1, 32>}, {transform_indices = @transform_18, window_bounds = array<i64: 2, 1, 1>}, {transform_indices = @transform_19, window_bounds = array<i64: 1, 2, 8>}]} {
    %c0 = arith.constant 0 : index
    %c0_0 = arith.constant 0 : index
    %0 = vector.load %arg1[%c0, %c0_0] : memref<4x8xf32, #tpu.memory_space<vmem>>, vector<4x8xf32>
    %c0_1 = arith.constant 0 : index
    %c0_2 = arith.constant 0 : index
    %1 = vector.load %arg2[%c0_1, %c0_2] : memref<32x4xf32, #tpu.memory_space<vmem>>, vector<32x4xf32>
    %c0_3 = arith.constant 0 : index
    %c0_4 = arith.constant 0 : index
    %2 = vector.load %arg3[%c0_3, %c0_4] : memref<32x4xf32, #tpu.memory_space<vmem>>, vector<32x4xf32>
    %c0_5 = arith.constant 0 : index
    %c0_6 = arith.constant 0 : index
    %c0_7 = arith.constant 0 : index
    %3 = vector.load %arg6[%c0_5, %c0_6, %c0_7] : memref<2x32x4xf32, #tpu.memory_space<vmem>>, vector<1x32x4xf32>
    %4 = vector.shape_cast %3 : vector<1x32x4xf32> to vector<32x4xf32>
    %5 = arith.mulf %2, %4 : vector<32x4xf32>
    %6 = arith.addf %1, %5 : vector<32x4xf32>
    %c0_8 = arith.constant 0 : index
    %c0_9 = arith.constant 0 : index
    %7 = vector.load %arg4[%c0_8, %c0_9] : memref<32x1xf32, #tpu.memory_space<vmem>>, vector<32x1xf32>
    %c0_10 = arith.constant 0 : index
    %c0_11 = arith.constant 0 : index
    %8 = vector.load %arg5[%c0_10, %c0_11] : memref<32x1xf32, #tpu.memory_space<vmem>>, vector<32x1xf32>
    %c0_12 = arith.constant 0 : index
    %c0_13 = arith.constant 0 : index
    %c0_14 = arith.constant 0 : index
    %9 = vector.load %arg7[%c0_12, %c0_13, %c0_14] : memref<2x32x1xf32, #tpu.memory_space<vmem>>, vector<1x32x1xf32>
    %10 = vector.shape_cast %9 : vector<1x32x1xf32> to vector<32x1xf32>
    %11 = arith.mulf %8, %10 : vector<32x1xf32>
    %12 = arith.addf %7, %11 : vector<32x1xf32>
    %cst = arith.constant dense<0.000000e+00> : vector<32x8xf32>
    %13 = tpu.matmul %6, %0, %cst {dimension_numbers = #tpu.dot_dimension_numbers<[1], [0], [0], [1], [0, 0, 1, 1], [], []>} : vector<32x4xf32>, vector<4x8xf32>, vector<32x8xf32> -> vector<32x8xf32>
    %14 = vector.broadcast %12 : vector<32x1xf32> to vector<32x8xf32>
    %15 = arith.addf %13, %14 : vector<32x8xf32>
    %cst_15 = arith.constant 0.000000e+00 : f32
    %16 = vector.broadcast %cst_15 : f32 to vector<32x8xf32>
    %17 = arith.maximumf %15, %16 : vector<32x8xf32>
    %c0_16 = arith.constant 0 : index
    %c0_17 = arith.constant 0 : index
    %18 = vector.load %arg8[%c0_16, %c0_17] : memref<32x32xf32, #tpu.memory_space<vmem>>, vector<32x32xf32>
    %c0_18 = arith.constant 0 : index
    %c0_19 = arith.constant 0 : index
    %19 = vector.load %arg9[%c0_18, %c0_19] : memref<32x32xf32, #tpu.memory_space<vmem>>, vector<32x32xf32>
    %c0_20 = arith.constant 0 : index
    %c0_21 = arith.constant 0 : index
    %c0_22 = arith.constant 0 : index
    %20 = vector.load %arg12[%c0_20, %c0_21, %c0_22] : memref<2x32x32xf32, #tpu.memory_space<vmem>>, vector<1x32x32xf32>
    %21 = vector.shape_cast %20 : vector<1x32x32xf32> to vector<32x32xf32>
    %22 = arith.mulf %19, %21 : vector<32x32xf32>
    %23 = arith.addf %18, %22 : vector<32x32xf32>
    %c0_23 = arith.constant 0 : index
    %c0_24 = arith.constant 0 : index
    %24 = vector.load %arg10[%c0_23, %c0_24] : memref<32x1xf32, #tpu.memory_space<vmem>>, vector<32x1xf32>
    %c0_25 = arith.constant 0 : index
    %c0_26 = arith.constant 0 : index
    %25 = vector.load %arg11[%c0_25, %c0_26] : memref<32x1xf32, #tpu.memory_space<vmem>>, vector<32x1xf32>
    %c0_27 = arith.constant 0 : index
    %c0_28 = arith.constant 0 : index
    %c0_29 = arith.constant 0 : index
    %26 = vector.load %arg13[%c0_27, %c0_28, %c0_29] : memref<2x32x1xf32, #tpu.memory_space<vmem>>, vector<1x32x1xf32>
    %27 = vector.shape_cast %26 : vector<1x32x1xf32> to vector<32x1xf32>
    %28 = arith.mulf %25, %27 : vector<32x1xf32>
    %29 = arith.addf %24, %28 : vector<32x1xf32>
    %cst_30 = arith.constant dense<0.000000e+00> : vector<32x8xf32>
    %30 = tpu.matmul %23, %17, %cst_30 {dimension_numbers = #tpu.dot_dimension_numbers<[1], [0], [0], [1], [0, 0, 1, 1], [], []>} : vector<32x32xf32>, vector<32x8xf32>, vector<32x8xf32> -> vector<32x8xf32>
    %31 = vector.broadcast %29 : vector<32x1xf32> to vector<32x8xf32>
    %32 = arith.addf %30, %31 : vector<32x8xf32>
    %cst_31 = arith.constant 0.000000e+00 : f32
    %33 = vector.broadcast %cst_31 : f32 to vector<32x8xf32>
    %34 = arith.maximumf %32, %33 : vector<32x8xf32>
    %c0_32 = arith.constant 0 : index
    %c0_33 = arith.constant 0 : index
    %35 = vector.load %arg14[%c0_32, %c0_33] : memref<1x32xf32, #tpu.memory_space<vmem>>, vector<1x32xf32>
    %c0_34 = arith.constant 0 : index
    %c0_35 = arith.constant 0 : index
    %36 = vector.load %arg15[%c0_34, %c0_35] : memref<1x32xf32, #tpu.memory_space<vmem>>, vector<1x32xf32>
    %c0_36 = arith.constant 0 : index
    %c0_37 = arith.constant 0 : index
    %c0_38 = arith.constant 0 : index
    %37 = vector.load %arg18[%c0_36, %c0_37, %c0_38] : memref<2x1x32xf32, #tpu.memory_space<vmem>>, vector<1x1x32xf32>
    %38 = vector.shape_cast %37 : vector<1x1x32xf32> to vector<1x32xf32>
    %39 = arith.mulf %36, %38 : vector<1x32xf32>
    %40 = arith.addf %35, %39 : vector<1x32xf32>
    %c0_39 = arith.constant 0 : index
    %c0_40 = arith.constant 0 : index
    %41 = vector.load %arg16[%c0_39, %c0_40] : memref<1x1xf32, #tpu.memory_space<vmem>>, vector<1x1xf32>
    %c0_41 = arith.constant 0 : index
    %c0_42 = arith.constant 0 : index
    %42 = vector.load %arg17[%c0_41, %c0_42] : memref<1x1xf32, #tpu.memory_space<vmem>>, vector<1x1xf32>
    %c0_43 = arith.constant 0 : index
    %c0_44 = arith.constant 0 : index
    %c0_45 = arith.constant 0 : index
    %43 = vector.load %arg19[%c0_43, %c0_44, %c0_45] : memref<2x1x1xf32, #tpu.memory_space<vmem>>, vector<1x1x1xf32>
    %44 = vector.shape_cast %43 : vector<1x1x1xf32> to vector<1x1xf32>
    %45 = arith.mulf %42, %44 : vector<1x1xf32>
    %46 = arith.addf %41, %45 : vector<1x1xf32>
    %cst_46 = arith.constant dense<0.000000e+00> : vector<1x8xf32>
    %47 = tpu.matmul %40, %34, %cst_46 {dimension_numbers = #tpu.dot_dimension_numbers<[1], [0], [0], [1], [0, 0, 1, 1], [], []>} : vector<1x32xf32>, vector<32x8xf32>, vector<1x8xf32> -> vector<1x8xf32>
    %48 = vector.broadcast %46 : vector<1x1xf32> to vector<1x8xf32>
    %49 = arith.addf %47, %48 : vector<1x8xf32>
    %c0_47 = arith.constant 0 : index
    %c0_48 = arith.constant 0 : index
    %50 = vector.load %arg2[%c0_47, %c0_48] : memref<32x4xf32, #tpu.memory_space<vmem>>, vector<32x4xf32>
    %c0_49 = arith.constant 0 : index
    %c0_50 = arith.constant 0 : index
    %51 = vector.load %arg3[%c0_49, %c0_50] : memref<32x4xf32, #tpu.memory_space<vmem>>, vector<32x4xf32>
    %c1 = arith.constant 1 : index
    %c0_51 = arith.constant 0 : index
    %c0_52 = arith.constant 0 : index
    %52 = vector.load %arg6[%c1, %c0_51, %c0_52] : memref<2x32x4xf32, #tpu.memory_space<vmem>>, vector<1x32x4xf32>
    %53 = vector.shape_cast %52 : vector<1x32x4xf32> to vector<32x4xf32>
    %54 = arith.mulf %51, %53 : vector<32x4xf32>
    %55 = arith.addf %50, %54 : vector<32x4xf32>
    %c0_53 = arith.constant 0 : index
    %c0_54 = arith.constant 0 : index
    %56 = vector.load %arg4[%c0_53, %c0_54] : memref<32x1xf32, #tpu.memory_space<vmem>>, vector<32x1xf32>
    %c0_55 = arith.constant 0 : index
    %c0_56 = arith.constant 0 : index
    %57 = vector.load %arg5[%c0_55, %c0_56] : memref<32x1xf32, #tpu.memory_space<vmem>>, vector<32x1xf32>
    %c1_57 = arith.constant 1 : index
    %c0_58 = arith.constant 0 : index
    %c0_59 = arith.constant 0 : index
    %58 = vector.load %arg7[%c1_57, %c0_58, %c0_59] : memref<2x32x1xf32, #tpu.memory_space<vmem>>, vector<1x32x1xf32>
    %59 = vector.shape_cast %58 : vector<1x32x1xf32> to vector<32x1xf32>
    %60 = arith.mulf %57, %59 : vector<32x1xf32>
    %61 = arith.addf %56, %60 : vector<32x1xf32>
    %cst_60 = arith.constant dense<0.000000e+00> : vector<32x8xf32>
    %62 = tpu.matmul %55, %0, %cst_60 {dimension_numbers = #tpu.dot_dimension_numbers<[1], [0], [0], [1], [0, 0, 1, 1], [], []>} : vector<32x4xf32>, vector<4x8xf32>, vector<32x8xf32> -> vector<32x8xf32>
    %63 = vector.broadcast %61 : vector<32x1xf32> to vector<32x8xf32>
    %64 = arith.addf %62, %63 : vector<32x8xf32>
    %cst_61 = arith.constant 0.000000e+00 : f32
    %65 = vector.broadcast %cst_61 : f32 to vector<32x8xf32>
    %66 = arith.maximumf %64, %65 : vector<32x8xf32>
    %c0_62 = arith.constant 0 : index
    %c0_63 = arith.constant 0 : index
    %67 = vector.load %arg8[%c0_62, %c0_63] : memref<32x32xf32, #tpu.memory_space<vmem>>, vector<32x32xf32>
    %c0_64 = arith.constant 0 : index
    %c0_65 = arith.constant 0 : index
    %68 = vector.load %arg9[%c0_64, %c0_65] : memref<32x32xf32, #tpu.memory_space<vmem>>, vector<32x32xf32>
    %c1_66 = arith.constant 1 : index
    %c0_67 = arith.constant 0 : index
    %c0_68 = arith.constant 0 : index
    %69 = vector.load %arg12[%c1_66, %c0_67, %c0_68] : memref<2x32x32xf32, #tpu.memory_space<vmem>>, vector<1x32x32xf32>
    %70 = vector.shape_cast %69 : vector<1x32x32xf32> to vector<32x32xf32>
    %71 = arith.mulf %68, %70 : vector<32x32xf32>
    %72 = arith.addf %67, %71 : vector<32x32xf32>
    %c0_69 = arith.constant 0 : index
    %c0_70 = arith.constant 0 : index
    %73 = vector.load %arg10[%c0_69, %c0_70] : memref<32x1xf32, #tpu.memory_space<vmem>>, vector<32x1xf32>
    %c0_71 = arith.constant 0 : index
    %c0_72 = arith.constant 0 : index
    %74 = vector.load %arg11[%c0_71, %c0_72] : memref<32x1xf32, #tpu.memory_space<vmem>>, vector<32x1xf32>
    %c1_73 = arith.constant 1 : index
    %c0_74 = arith.constant 0 : index
    %c0_75 = arith.constant 0 : index
    %75 = vector.load %arg13[%c1_73, %c0_74, %c0_75] : memref<2x32x1xf32, #tpu.memory_space<vmem>>, vector<1x32x1xf32>
    %76 = vector.shape_cast %75 : vector<1x32x1xf32> to vector<32x1xf32>
    %77 = arith.mulf %74, %76 : vector<32x1xf32>
    %78 = arith.addf %73, %77 : vector<32x1xf32>
    %cst_76 = arith.constant dense<0.000000e+00> : vector<32x8xf32>
    %79 = tpu.matmul %72, %66, %cst_76 {dimension_numbers = #tpu.dot_dimension_numbers<[1], [0], [0], [1], [0, 0, 1, 1], [], []>} : vector<32x32xf32>, vector<32x8xf32>, vector<32x8xf32> -> vector<32x8xf32>
    %80 = vector.broadcast %78 : vector<32x1xf32> to vector<32x8xf32>
    %81 = arith.addf %79, %80 : vector<32x8xf32>
    %cst_77 = arith.constant 0.000000e+00 : f32
    %82 = vector.broadcast %cst_77 : f32 to vector<32x8xf32>
    %83 = arith.maximumf %81, %82 : vector<32x8xf32>
    %c0_78 = arith.constant 0 : index
    %c0_79 = arith.constant 0 : index
    %84 = vector.load %arg14[%c0_78, %c0_79] : memref<1x32xf32, #tpu.memory_space<vmem>>, vector<1x32xf32>
    %c0_80 = arith.constant 0 : index
    %c0_81 = arith.constant 0 : index
    %85 = vector.load %arg15[%c0_80, %c0_81] : memref<1x32xf32, #tpu.memory_space<vmem>>, vector<1x32xf32>
    %c1_82 = arith.constant 1 : index
    %c0_83 = arith.constant 0 : index
    %c0_84 = arith.constant 0 : index
    %86 = vector.load %arg18[%c1_82, %c0_83, %c0_84] : memref<2x1x32xf32, #tpu.memory_space<vmem>>, vector<1x1x32xf32>
    %87 = vector.shape_cast %86 : vector<1x1x32xf32> to vector<1x32xf32>
    %88 = arith.mulf %85, %87 : vector<1x32xf32>
    %89 = arith.addf %84, %88 : vector<1x32xf32>
    %c0_85 = arith.constant 0 : index
    %c0_86 = arith.constant 0 : index
    %90 = vector.load %arg16[%c0_85, %c0_86] : memref<1x1xf32, #tpu.memory_space<vmem>>, vector<1x1xf32>
    %c0_87 = arith.constant 0 : index
    %c0_88 = arith.constant 0 : index
    %91 = vector.load %arg17[%c0_87, %c0_88] : memref<1x1xf32, #tpu.memory_space<vmem>>, vector<1x1xf32>
    %c1_89 = arith.constant 1 : index
    %c0_90 = arith.constant 0 : index
    %c0_91 = arith.constant 0 : index
    %92 = vector.load %arg19[%c1_89, %c0_90, %c0_91] : memref<2x1x1xf32, #tpu.memory_space<vmem>>, vector<1x1x1xf32>
    %93 = vector.shape_cast %92 : vector<1x1x1xf32> to vector<1x1xf32>
    %94 = arith.mulf %91, %93 : vector<1x1xf32>
    %95 = arith.addf %90, %94 : vector<1x1xf32>
    %cst_92 = arith.constant dense<0.000000e+00> : vector<1x8xf32>
    %96 = tpu.matmul %89, %83, %cst_92 {dimension_numbers = #tpu.dot_dimension_numbers<[1], [0], [0], [1], [0, 0, 1, 1], [], []>} : vector<1x32xf32>, vector<32x8xf32>, vector<1x8xf32> -> vector<1x8xf32>
    %97 = vector.broadcast %95 : vector<1x1xf32> to vector<1x8xf32>
    %98 = arith.addf %96, %97 : vector<1x8xf32>
    %99 = tpu.concatenate %49, %98 in 0 : vector<1x8xf32>, vector<1x8xf32> -> vector<2x8xf32>
    %c0_93 = arith.constant 0 : index
    %c0_94 = arith.constant 0 : index
    %c0_95 = arith.constant 0 : index
    %100 = vector.load %arg20[%c0_93, %c0_94, %c0_95] : memref<1x2x8xf32, #tpu.memory_space<vmem>>, vector<1x2x8xf32>
    %101 = vector.shape_cast %100 : vector<1x2x8xf32> to vector<2x8xf32>
    %102 = vector.shape_cast %99 : vector<2x8xf32> to vector<1x2x8xf32>
    tpu.vector_store %arg20[%c0_93, %c0_94, %c0_95], %102 {strides = array<i32>} : memref<1x2x8xf32, #tpu.memory_space<vmem>>, vector<1x2x8xf32>,
    return
  }
  func.func @transform_0(%arg0: i32) -> (i32, i32) {
    %c0_i32 = arith.constant 0 : i32
    %c0_i32_0 = arith.constant 0 : i32
    %c0_i32_1 = arith.constant 0 : i32
    return %c0_i32, %c0_i32_0 : i32, i32
  }
  func.func @transform_1(%arg0: i32) -> (i32, i32) {
    %c0_i32 = arith.constant 0 : i32
    %c0_i32_0 = arith.constant 0 : i32
    %c0_i32_1 = arith.constant 0 : i32
    return %c0_i32, %c0_i32_0 : i32, i32
  }
  func.func @transform_2(%arg0: i32) -> (i32, i32) {
    %c0_i32 = arith.constant 0 : i32
    %c0_i32_0 = arith.constant 0 : i32
    %c0_i32_1 = arith.constant 0 : i32
    return %c0_i32, %c0_i32_0 : i32, i32
  }
  func.func @transform_3(%arg0: i32) -> (i32, i32) {
    %c0_i32 = arith.constant 0 : i32
    %c0_i32_0 = arith.constant 0 : i32
    %c0_i32_1 = arith.constant 0 : i32
    return %c0_i32, %c0_i32_0 : i32, i32
  }
  func.func @transform_4(%arg0: i32) -> (i32, i32) {
    %c0_i32 = arith.constant 0 : i32
    %c0_i32_0 = arith.constant 0 : i32
    %c0_i32_1 = arith.constant 0 : i32
    return %c0_i32, %c0_i32_0 : i32, i32
  }
  func.func @transform_5(%arg0: i32) -> (i32, i32, i32) {
    %c0_i32 = arith.constant 0 : i32
    %c0_i32_0 = arith.constant 0 : i32
    %c0_i32_1 = arith.constant 0 : i32
    return %arg0, %c0_i32, %c0_i32_0 : i32, i32, i32
  }
  func.func @transform_6(%arg0: i32) -> (i32, i32, i32) {
    %c0_i32 = arith.constant 0 : i32
    %c0_i32_0 = arith.constant 0 : i32
    %c0_i32_1 = arith.constant 0 : i32
    return %arg0, %c0_i32, %c0_i32_0 : i32, i32, i32
  }
  func.func @transform_7(%arg0: i32) -> (i32, i32) {
    %c0_i32 = arith.constant 0 : i32
    %c0_i32_0 = arith.constant 0 : i32
    %c0_i32_1 = arith.constant 0 : i32
    return %c0_i32, %c0_i32_0 : i32, i32
  }
  func.func @transform_8(%arg0: i32) -> (i32, i32) {
    %c0_i32 = arith.constant 0 : i32
    %c0_i32_0 = arith.constant 0 : i32
    %c0_i32_1 = arith.constant 0 : i32
    return %c0_i32, %c0_i32_0 : i32, i32
  }
  func.func @transform_9(%arg0: i32) -> (i32, i32) {
    %c0_i32 = arith.constant 0 : i32
    %c0_i32_0 = arith.constant 0 : i32
    %c0_i32_1 = arith.constant 0 : i32
    return %c0_i32, %c0_i32_0 : i32, i32
  }
  func.func @transform_10(%arg0: i32) -> (i32, i32) {
    %c0_i32 = arith.constant 0 : i32
    %c0_i32_0 = arith.constant 0 : i32
    %c0_i32_1 = arith.constant 0 : i32
    return %c0_i32, %c0_i32_0 : i32, i32
  }
  func.func @transform_11(%arg0: i32) -> (i32, i32, i32) {
    %c0_i32 = arith.constant 0 : i32
    %c0_i32_0 = arith.constant 0 : i32
    %c0_i32_1 = arith.constant 0 : i32
    return %arg0, %c0_i32, %c0_i32_0 : i32, i32, i32
  }
  func.func @transform_12(%arg0: i32) -> (i32, i32, i32) {
    %c0_i32 = arith.constant 0 : i32
    %c0_i32_0 = arith.constant 0 : i32
    %c0_i32_1 = arith.constant 0 : i32
    return %arg0, %c0_i32, %c0_i32_0 : i32, i32, i32
  }
  func.func @transform_13(%arg0: i32) -> (i32, i32) {
    %c0_i32 = arith.constant 0 : i32
    %c0_i32_0 = arith.constant 0 : i32
    %c0_i32_1 = arith.constant 0 : i32
    return %c0_i32, %c0_i32_0 : i32, i32
  }
  func.func @transform_14(%arg0: i32) -> (i32, i32) {
    %c0_i32 = arith.constant 0 : i32
    %c0_i32_0 = arith.constant 0 : i32
    %c0_i32_1 = arith.constant 0 : i32
    return %c0_i32, %c0_i32_0 : i32, i32
  }
  func.func @transform_15(%arg0: i32) -> (i32, i32) {
    %c0_i32 = arith.constant 0 : i32
    %c0_i32_0 = arith.constant 0 : i32
    %c0_i32_1 = arith.constant 0 : i32
    return %c0_i32, %c0_i32_0 : i32, i32
  }
  func.func @transform_16(%arg0: i32) -> (i32, i32) {
    %c0_i32 = arith.constant 0 : i32
    %c0_i32_0 = arith.constant 0 : i32
    %c0_i32_1 = arith.constant 0 : i32
    return %c0_i32, %c0_i32_0 : i32, i32
  }
  func.func @transform_17(%arg0: i32) -> (i32, i32, i32) {
    %c0_i32 = arith.constant 0 : i32
    %c0_i32_0 = arith.constant 0 : i32
    %c0_i32_1 = arith.constant 0 : i32
    return %arg0, %c0_i32, %c0_i32_0 : i32, i32, i32
  }
  func.func @transform_18(%arg0: i32) -> (i32, i32, i32) {
    %c0_i32 = arith.constant 0 : i32
    %c0_i32_0 = arith.constant 0 : i32
    %c0_i32_1 = arith.constant 0 : i32
    return %arg0, %c0_i32, %c0_i32_0 : i32, i32, i32
  }
  func.func @transform_19(%arg0: i32) -> (i32, i32, i32) {
    %c0_i32 = arith.constant 0 : i32
    %c0_i32_0 = arith.constant 0 : i32
    %c0_i32_1 = arith.constant 0 : i32
    return %arg0, %c0_i32, %c0_i32_0 : i32, i32, i32
  }
}

</mosaic_0001>

<llo_original>
// kernel: _bnn_forward.1
$region0: #{_bnn_forward.1}
  #allocation0 [shape = 'u32[]', space=smem, size = 0x4, offset = 0x4, fixed_abs, tag = 'smem constant byte address 0x4 - core index']
  #allocation1 [shape = 'u32[72,128]{1,0:T(1,128)}', space=vmem, size = 0x9000, scoped, tag = 'internal scratch']
  #allocation2 [shape = 'f32[1,1]{1,0:T(1,128)S(1)}', space=vmem, size = 0x200, scoped, tag = 'scoped memory for _bnn_forward.1']
  #allocation3 [shape = 'f32[1,1]{1,0:T(1,128)S(1)}', space=vmem, size = 0x200, scoped, tag = 'scoped memory for _bnn_forward.1']
  %s0 = inlined_call_operand.vmem [shape: f32[4,8], index: 0, kind: input, shape index: {}]
  %s1 = inlined_call_operand.vmem [shape: f32[32,4], index: 1, kind: input, shape index: {}]
  %s2 = inlined_call_operand.vmem [shape: f32[32,4], index: 2, kind: input, shape index: {}]
  %s3 = inlined_call_operand.vmem [shape: f32[32,1], index: 3, kind: input, shape index: {}]
  %s4 = inlined_call_operand.vmem [shape: f32[32,1], index: 4, kind: input, shape index: {}]
  %s5 = inlined_call_operand.vmem [shape: f32[4,32,4], index: 5, kind: input, shape index: {}]
  %s6 = inlined_call_operand.vmem [shape: f32[4,32,1], index: 6, kind: input, shape index: {}]
  %s7 = inlined_call_operand.vmem [shape: f32[32,32], index: 7, kind: input, shape index: {}]
  %s8 = inlined_call_operand.vmem [shape: f32[32,32], index: 8, kind: input, shape index: {}]
  %s9 = inlined_call_operand.vmem [shape: f32[32,1], index: 9, kind: input, shape index: {}]
  %s10 = inlined_call_operand.vmem [shape: f32[32,1], index: 10, kind: input, shape index: {}]
  %s11 = inlined_call_operand.vmem [shape: f32[4,32,32], index: 11, kind: input, shape index: {}]
  %s12 = inlined_call_operand.vmem [shape: f32[4,32,1], index: 12, kind: input, shape index: {}]
  %s13 = inlined_call_operand.vmem [shape: f32[1,32], index: 13, kind: input, shape index: {}]
  %s14 = inlined_call_operand.vmem [shape: f32[1,32], index: 14, kind: input, shape index: {}]
  %s15 = inlined_call_operand.<no memory space> [shape: f32[1,1], index: 15, kind: input, shape index: {}]
  %s16 = inlined_call_operand.<no memory space> [shape: f32[1,1], index: 16, kind: input, shape index: {}]
  %s17 = inlined_call_operand.vmem [shape: f32[4,1,32], index: 17, kind: input, shape index: {}]
  %s18 = inlined_call_operand.vmem [shape: f32[4,1,1], index: 18, kind: input, shape index: {}]
  %s19 = inlined_call_operand.hbm [shape: f32[2,2,8], index: 19, kind: output, shape index: {}]
  %s20 = sld [smem:[#allocation0]]
  $region109: #{_bnn_forward.1} parent=0
    _
  %s22 = ssub.s32 1, %s20
  %s23 = scalar_select 0, %s22, %s20
  %v24 = vstv %s15
  %25 = vst [vmem:[#allocation2] sm:$0x1] %v24
  %v26 = vstv %s16
  %27 = vst [vmem:[#allocation3] sm:$0x1] %v26
  $region1: #{_bnn_forward.1} parent=0
    #allocation4 [shape = 'u8[2048]{0}', space=vmem, size = 0x800, scoped, tag = 'output window, operand 0']
    #allocation5 [shape = 's32[2]{0}', space=sflag, size = 0x8, scoped, tag = 'scoped memory for _bnn_forward.1']
    %28 = vsyncpa [#allocation5], 0
    %s29 = scalar_lea.sflag [#allocation5], 1
    %30 = vsyncpa %s29, 0
    loop: start=0, step=1, limit=4
    $region2: #{_bnn_forward.1} parent=1 // loop_pre_header
      _
    $region3: #{_bnn_forward.1} parent=1 // loop_header
      %s32 = sphi 0, %s36
      %p33 = scmp.ge.s32.totalorder %s32, 4
      %s40 = sphi 0, %s40
      %s42 = sphi 0, %s40
      %s43 = sphi 0, %s42
      %s57 = sphi 0, %s43
      %s61 = sphi 0, %s61
      %s63 = sphi 0, %s61
      %s64 = sphi 0, %s63
      %s78 = sphi 0, %s64
      %s82 = sphi 0, %s82
      %s84 = sphi 0, %s82
      %s85 = sphi 0, %s84
      %s99 = sphi 0, %s85
      %s103 = sphi 0, %s103
      %s105 = sphi 0, %s103
      %s106 = sphi 0, %s105
      %s120 = sphi 0, %s106
      %s124 = sphi 0, %s124
      %s126 = sphi 0, %s124
      %s127 = sphi 0, %s126
      %s141 = sphi 0, %s127
      %s147 = sphi 0, %s149
      %s150 = sphi 0, %s147
      %s151 = sphi 0, %s150
      %s167 = sphi 0, %s151
      %s173 = sphi 0, %s175
      %s176 = sphi 0, %s173
      %s177 = sphi 0, %s176
      %s193 = sphi 0, %s177
      %s197 = sphi 0, %s197
      %s199 = sphi 0, %s197
      %s200 = sphi 0, %s199
      %s214 = sphi 0, %s200
      %s218 = sphi 0, %s218
      %s220 = sphi 0, %s218
      %s221 = sphi 0, %s220
      %s235 = sphi 0, %s221
      %s239 = sphi 0, %s239
      %s241 = sphi 0, %s239
      %s242 = sphi 0, %s241
      %s256 = sphi 0, %s242
      %s260 = sphi 0, %s260
      %s262 = sphi 0, %s260
      %s263 = sphi 0, %s262
      %s277 = sphi 0, %s263
      %s283 = sphi 0, %s285
      %s286 = sphi 0, %s283
      %s287 = sphi 0, %s286
      %s303 = sphi 0, %s287
      %s309 = sphi 0, %s311
      %s312 = sphi 0, %s309
      %s313 = sphi 0, %s312
      %s329 = sphi 0, %s313
      %s333 = sphi 0, %s333
      %s335 = sphi 0, %s333
      %s336 = sphi 0, %s335
      %s350 = sphi 0, %s336
      %s354 = sphi 0, %s354
      %s356 = sphi 0, %s354
      %s357 = sphi 0, %s356
      %s371 = sphi 0, %s357
      %s375 = sphi 0, %s375
      %s377 = sphi 0, %s375
      %s378 = sphi 0, %s377
      %s392 = sphi 0, %s378
      %s396 = sphi 0, %s396
      %s398 = sphi 0, %s396
      %s399 = sphi 0, %s398
      %s413 = sphi 0, %s399
      %s419 = sphi 0, %s421
      %s422 = sphi 0, %s419
      %s423 = sphi 0, %s422
      %s439 = sphi 0, %s423
      %s445 = sphi 0, %s447
      %s448 = sphi 0, %s445
      %s449 = sphi 0, %s448
      %s465 = sphi 0, %s449
      %s471 = sphi 0, %s473
      %s474 = sphi 0, %s471
      %s475 = sphi 0, %s474
      %s491 = sphi 0, %s475
    $region4: #{_bnn_forward.1} parent=1 // loop_header_branch
      %35 = sbr.rel (%p33) target = $region8
    $region5: #{_bnn_forward.1} parent=1 // loop_body
      %s37 = ssub.s32 %s32, 1
      %s38 = ssub.s32 %s32, 2
      %s39 = sadd.s32 %s32, 1
      %s41 = sadd.s32 %s40, 1
      %p44 = scmp.eq.s32.totalorder %s32, 1
      %p45 = scmp.ne.s32.totalorder %s40, %s42
      %p46 = scmp.eq.s32.totalorder %s32, 0
      %p47 = por %p45, %p46
      %p48 = scmp.ne.s32.totalorder %s40, %s42
      %p49 = scmp.eq.s32.totalorder %s37, 1
      %p50 = por %p48, %p49
      %p51 = scmp.ne.s32.totalorder %s42, %s43
      %p52 = scmp.eq.s32.totalorder %s37, 0
      %p53 = por %p51, %p52
      %p54 = scmp.ne.s32.totalorder %s42, %s43
      %p55 = scmp.eq.s32.totalorder %s38, 1
      %p56 = por %p54, %p55
      %p58 = scmp.ne.s32.totalorder %s43, %s57
      %p59 = scmp.eq.s32.totalorder %s38, 0
      %p60 = por %p58, %p59
      %s62 = sadd.s32 %s61, 1
      %p65 = scmp.eq.s32.totalorder %s32, 1
      %p66 = scmp.ne.s32.totalorder %s61, %s63
      %p67 = scmp.eq.s32.totalorder %s32, 0
      %p68 = por %p66, %p67
      %p69 = scmp.ne.s32.totalorder %s61, %s63
      %p70 = scmp.eq.s32.totalorder %s37, 1
      %p71 = por %p69, %p70
      %p72 = scmp.ne.s32.totalorder %s63, %s64
      %p73 = scmp.eq.s32.totalorder %s37, 0
      %p74 = por %p72, %p73
      %p75 = scmp.ne.s32.totalorder %s63, %s64
      %p76 = scmp.eq.s32.totalorder %s38, 1
      %p77 = por %p75, %p76
      %p79 = scmp.ne.s32.totalorder %s64, %s78
      %p80 = scmp.eq.s32.totalorder %s38, 0
      %p81 = por %p79, %p80
      %s83 = sadd.s32 %s82, 1
      %p86 = scmp.eq.s32.totalorder %s32, 1
      %p87 = scmp.ne.s32.totalorder %s82, %s84
      %p88 = scmp.eq.s32.totalorder %s32, 0
      %p89 = por %p87, %p88
      %p90 = scmp.ne.s32.totalorder %s82, %s84
      %p91 = scmp.eq.s32.totalorder %s37, 1
      %p92 = por %p90, %p91
      %p93 = scmp.ne.s32.totalorder %s84, %s85
      %p94 = scmp.eq.s32.totalorder %s37, 0
      %p95 = por %p93, %p94
      %p96 = scmp.ne.s32.totalorder %s84, %s85
      %p97 = scmp.eq.s32.totalorder %s38, 1
      %p98 = por %p96, %p97
      %p100 = scmp.ne.s32.totalorder %s85, %s99
      %p101 = scmp.eq.s32.totalorder %s38, 0
      %p102 = por %p100, %p101
      %s104 = sadd.s32 %s103, 1
      %p107 = scmp.eq.s32.totalorder %s32, 1
      %p108 = scmp.ne.s32.totalorder %s103, %s105
      %p109 = scmp.eq.s32.totalorder %s32, 0
      %p110 = por %p108, %p109
      %p111 = scmp.ne.s32.totalorder %s103, %s105
      %p112 = scmp.eq.s32.totalorder %s37, 1
      %p113 = por %p111, %p112
      %p114 = scmp.ne.s32.totalorder %s105, %s106
      %p115 = scmp.eq.s32.totalorder %s37, 0
      %p116 = por %p114, %p115
      %p117 = scmp.ne.s32.totalorder %s105, %s106
      %p118 = scmp.eq.s32.totalorder %s38, 1
      %p119 = por %p117, %p118
      %p121 = scmp.ne.s32.totalorder %s106, %s120
      %p122 = scmp.eq.s32.totalorder %s38, 0
      %p123 = por %p121, %p122
      %s125 = sadd.s32 %s124, 1
      %p128 = scmp.eq.s32.totalorder %s32, 1
      %p129 = scmp.ne.s32.totalorder %s124, %s126
      %p130 = scmp.eq.s32.totalorder %s32, 0
      %p131 = por %p129, %p130
      %p132 = scmp.ne.s32.totalorder %s124, %s126
      %p133 = scmp.eq.s32.totalorder %s37, 1
      %p134 = por %p132, %p133
      %p135 = scmp.ne.s32.totalorder %s126, %s127
      %p136 = scmp.eq.s32.totalorder %s37, 0
      %p137 = por %p135, %p136
      %p138 = scmp.ne.s32.totalorder %s126, %s127
      %p139 = scmp.eq.s32.totalorder %s38, 1
      %p140 = por %p138, %p139
      %p142 = scmp.ne.s32.totalorder %s127, %s141
      %p143 = scmp.eq.s32.totalorder %s38, 0
      %p144 = por %p142, %p143
      %s145 = ssub.s32 %s32, %s39
      %p146 = scmp.eq.s32.totalorder %s145, 0
      %s148 = sadd.s32 %s147, 1
      %s149 = scalar_select %p146, %s147, %s148
      %p152 = pneg %p146
      %p153 = scmp.eq.s32.totalorder %s32, 1
      %p154 = por %p152, %p153
      %p155 = scmp.ne.s32.totalorder %s147, %s150
      %p156 = scmp.eq.s32.totalorder %s32, 0
      %p157 = por %p155, %p156
      %p158 = scmp.ne.s32.totalorder %s147, %s150
      %p159 = scmp.eq.s32.totalorder %s37, 1
      %p160 = por %p158, %p159
      %p161 = scmp.ne.s32.totalorder %s150, %s151
      %p162 = scmp.eq.s32.totalorder %s37, 0
      %p163 = por %p161, %p162
      %p164 = scmp.ne.s32.totalorder %s150, %s151
      %p165 = scmp.eq.s32.totalorder %s38, 1
      %p166 = por %p164, %p165
      %p168 = scmp.ne.s32.totalorder %s151, %s167
      %p169 = scmp.eq.s32.totalorder %s38, 0
      %p170 = por %p168, %p169
      %s171 = ssub.s32 %s32, %s39
      %p172 = scmp.eq.s32.totalorder %s171, 0
      %s174 = sadd.s32 %s173, 1
      %s175 = scalar_select %p172, %s173, %s174
      %p178 = pneg %p172
      %p179 = scmp.eq.s32.totalorder %s32, 1
      %p180 = por %p178, %p179
      %p181 = scmp.ne.s32.totalorder %s173, %s176
      %p182 = scmp.eq.s32.totalorder %s32, 0
      %p183 = por %p181, %p182
      %p184 = scmp.ne.s32.totalorder %s173, %s176
      %p185 = scmp.eq.s32.totalorder %s37, 1
      %p186 = por %p184, %p185
      %p187 = scmp.ne.s32.totalorder %s176, %s177
      %p188 = scmp.eq.s32.totalorder %s37, 0
      %p189 = por %p187, %p188
      %p190 = scmp.ne.s32.totalorder %s176, %s177
      %p191 = scmp.eq.s32.totalorder %s38, 1
      %p192 = por %p190, %p191
      %p194 = scmp.ne.s32.totalorder %s177, %s193
      %p195 = scmp.eq.s32.totalorder %s38, 0
      %p196 = por %p194, %p195
      %s198 = sadd.s32 %s197, 1
      %p201 = scmp.eq.s32.totalorder %s32, 1
      %p202 = scmp.ne.s32.totalorder %s197, %s199
      %p203 = scmp.eq.s32.totalorder %s32, 0
      %p204 = por %p202, %p203
      %p205 = scmp.ne.s32.totalorder %s197, %s199
      %p206 = scmp.eq.s32.totalorder %s37, 1
      %p207 = por %p205, %p206
      %p208 = scmp.ne.s32.totalorder %s199, %s200
      %p209 = scmp.eq.s32.totalorder %s37, 0
      %p210 = por %p208, %p209
      %p211 = scmp.ne.s32.totalorder %s199, %s200
      %p212 = scmp.eq.s32.totalorder %s38, 1
      %p213 = por %p211, %p212
      %p215 = scmp.ne.s32.totalorder %s200, %s214
      %p216 = scmp.eq.s32.totalorder %s38, 0
      %p217 = por %p215, %p216
      %s219 = sadd.s32 %s218, 1
      %p222 = scmp.eq.s32.totalorder %s32, 1
      %p223 = scmp.ne.s32.totalorder %s218, %s220
      %p224 = scmp.eq.s32.totalorder %s32, 0
      %p225 = por %p223, %p224
      %p226 = scmp.ne.s32.totalorder %s218, %s220
      %p227 = scmp.eq.s32.totalorder %s37, 1
      %p228 = por %p226, %p227
      %p229 = scmp.ne.s32.totalorder %s220, %s221
      %p230 = scmp.eq.s32.totalorder %s37, 0
      %p231 = por %p229, %p230
      %p232 = scmp.ne.s32.totalorder %s220, %s221
      %p233 = scmp.eq.s32.totalorder %s38, 1
      %p234 = por %p232, %p233
      %p236 = scmp.ne.s32.totalorder %s221, %s235
      %p237 = scmp.eq.s32.totalorder %s38, 0
      %p238 = por %p236, %p237
      %s240 = sadd.s32 %s239, 1
      %p243 = scmp.eq.s32.totalorder %s32, 1
      %p244 = scmp.ne.s32.totalorder %s239, %s241
      %p245 = scmp.eq.s32.totalorder %s32, 0
      %p246 = por %p244, %p245
      %p247 = scmp.ne.s32.totalorder %s239, %s241
      %p248 = scmp.eq.s32.totalorder %s37, 1
      %p249 = por %p247, %p248
      %p250 = scmp.ne.s32.totalorder %s241, %s242
      %p251 = scmp.eq.s32.totalorder %s37, 0
      %p252 = por %p250, %p251
      %p253 = scmp.ne.s32.totalorder %s241, %s242
      %p254 = scmp.eq.s32.totalorder %s38, 1
      %p255 = por %p253, %p254
      %p257 = scmp.ne.s32.totalorder %s242, %s256
      %p258 = scmp.eq.s32.totalorder %s38, 0
      %p259 = por %p257, %p258
      %s261 = sadd.s32 %s260, 1
      %p264 = scmp.eq.s32.totalorder %s32, 1
      %p265 = scmp.ne.s32.totalorder %s260, %s262
      %p266 = scmp.eq.s32.totalorder %s32, 0
      %p267 = por %p265, %p266
      %p268 = scmp.ne.s32.totalorder %s260, %s262
      %p269 = scmp.eq.s32.totalorder %s37, 1
      %p270 = por %p268, %p269
      %p271 = scmp.ne.s32.totalorder %s262, %s263
      %p272 = scmp.eq.s32.totalorder %s37, 0
      %p273 = por %p271, %p272
      %p274 = scmp.ne.s32.totalorder %s262, %s263
      %p275 = scmp.eq.s32.totalorder %s38, 1
      %p276 = por %p274, %p275
      %p278 = scmp.ne.s32.totalorder %s263, %s277
      %p279 = scmp.eq.s32.totalorder %s38, 0
      %p280 = por %p278, %p279
      %s281 = ssub.s32 %s32, %s39
      %p282 = scmp.eq.s32.totalorder %s281, 0
      %s284 = sadd.s32 %s283, 1
      %s285 = scalar_select %p282, %s283, %s284
      %p288 = pneg %p282
      %p289 = scmp.eq.s32.totalorder %s32, 1
      %p290 = por %p288, %p289
      %p291 = scmp.ne.s32.totalorder %s283, %s286
      %p292 = scmp.eq.s32.totalorder %s32, 0
      %p293 = por %p291, %p292
      %p294 = scmp.ne.s32.totalorder %s283, %s286
      %p295 = scmp.eq.s32.totalorder %s37, 1
      %p296 = por %p294, %p295
      %p297 = scmp.ne.s32.totalorder %s286, %s287
      %p298 = scmp.eq.s32.totalorder %s37, 0
      %p299 = por %p297, %p298
      %p300 = scmp.ne.s32.totalorder %s286, %s287
      %p301 = scmp.eq.s32.totalorder %s38, 1
      %p302 = por %p300, %p301
      %p304 = scmp.ne.s32.totalorder %s287, %s303
      %p305 = scmp.eq.s32.totalorder %s38, 0
      %p306 = por %p304, %p305
      %s307 = ssub.s32 %s32, %s39
      %p308 = scmp.eq.s32.totalorder %s307, 0
      %s310 = sadd.s32 %s309, 1
      %s311 = scalar_select %p308, %s309, %s310
      %p314 = pneg %p308
      %p315 = scmp.eq.s32.totalorder %s32, 1
      %p316 = por %p314, %p315
      %p317 = scmp.ne.s32.totalorder %s309, %s312
      %p318 = scmp.eq.s32.totalorder %s32, 0
      %p319 = por %p317, %p318
      %p320 = scmp.ne.s32.totalorder %s309, %s312
      %p321 = scmp.eq.s32.totalorder %s37, 1
      %p322 = por %p320, %p321
      %p323 = scmp.ne.s32.totalorder %s312, %s313
      %p324 = scmp.eq.s32.totalorder %s37, 0
      %p325 = por %p323, %p324
      %p326 = scmp.ne.s32.totalorder %s312, %s313
      %p327 = scmp.eq.s32.totalorder %s38, 1
      %p328 = por %p326, %p327
      %p330 = scmp.ne.s32.totalorder %s313, %s329
      %p331 = scmp.eq.s32.totalorder %s38, 0
      %p332 = por %p330, %p331
      %s334 = sadd.s32 %s333, 1
      %p337 = scmp.eq.s32.totalorder %s32, 1
      %p338 = scmp.ne.s32.totalorder %s333, %s335
      %p339 = scmp.eq.s32.totalorder %s32, 0
      %p340 = por %p338, %p339
      %p341 = scmp.ne.s32.totalorder %s333, %s335
      %p342 = scmp.eq.s32.totalorder %s37, 1
      %p343 = por %p341, %p342
      %p344 = scmp.ne.s32.totalorder %s335, %s336
      %p345 = scmp.eq.s32.totalorder %s37, 0
      %p346 = por %p344, %p345
      %p347 = scmp.ne.s32.totalorder %s335, %s336
      %p348 = scmp.eq.s32.totalorder %s38, 1
      %p349 = por %p347, %p348
      %p351 = scmp.ne.s32.totalorder %s336, %s350
      %p352 = scmp.eq.s32.totalorder %s38, 0
      %p353 = por %p351, %p352
      %s355 = sadd.s32 %s354, 1
      %p358 = scmp.eq.s32.totalorder %s32, 1
      %p359 = scmp.ne.s32.totalorder %s354, %s356
      %p360 = scmp.eq.s32.totalorder %s32, 0
      %p361 = por %p359, %p360
      %p362 = scmp.ne.s32.totalorder %s354, %s356
      %p363 = scmp.eq.s32.totalorder %s37, 1
      %p364 = por %p362, %p363
      %p365 = scmp.ne.s32.totalorder %s356, %s357
      %p366 = scmp.eq.s32.totalorder %s37, 0
      %p367 = por %p365, %p366
      %p368 = scmp.ne.s32.totalorder %s356, %s357
      %p369 = scmp.eq.s32.totalorder %s38, 1
      %p370 = por %p368, %p369
      %p372 = scmp.ne.s32.totalorder %s357, %s371
      %p373 = scmp.eq.s32.totalorder %s38, 0
      %p374 = por %p372, %p373
      %s376 = sadd.s32 %s375, 1
      %p379 = scmp.eq.s32.totalorder %s32, 1
      %p380 = scmp.ne.s32.totalorder %s375, %s377
      %p381 = scmp.eq.s32.totalorder %s32, 0
      %p382 = por %p380, %p381
      %p383 = scmp.ne.s32.totalorder %s375, %s377
      %p384 = scmp.eq.s32.totalorder %s37, 1
      %p385 = por %p383, %p384
      %p386 = scmp.ne.s32.totalorder %s377, %s378
      %p387 = scmp.eq.s32.totalorder %s37, 0
      %p388 = por %p386, %p387
      %p389 = scmp.ne.s32.totalorder %s377, %s378
      %p390 = scmp.eq.s32.totalorder %s38, 1
      %p391 = por %p389, %p390
      %p393 = scmp.ne.s32.totalorder %s378, %s392
      %p394 = scmp.eq.s32.totalorder %s38, 0
      %p395 = por %p393, %p394
      %s397 = sadd.s32 %s396, 1
      %p400 = scmp.eq.s32.totalorder %s32, 1
      %p401 = scmp.ne.s32.totalorder %s396, %s398
      %p402 = scmp.eq.s32.totalorder %s32, 0
      %p403 = por %p401, %p402
      %p404 = scmp.ne.s32.totalorder %s396, %s398
      %p405 = scmp.eq.s32.totalorder %s37, 1
      %p406 = por %p404, %p405
      %p407 = scmp.ne.s32.totalorder %s398, %s399
      %p408 = scmp.eq.s32.totalorder %s37, 0
      %p409 = por %p407, %p408
      %p410 = scmp.ne.s32.totalorder %s398, %s399
      %p411 = scmp.eq.s32.totalorder %s38, 1
      %p412 = por %p410, %p411
      %p414 = scmp.ne.s32.totalorder %s399, %s413
      %p415 = scmp.eq.s32.totalorder %s38, 0
      %p416 = por %p414, %p415
      %s417 = ssub.s32 %s32, %s39
      %p418 = scmp.eq.s32.totalorder %s417, 0
      %s420 = sadd.s32 %s419, 1
      %s421 = scalar_select %p418, %s419, %s420
      %p424 = pneg %p418
      %p425 = scmp.eq.s32.totalorder %s32, 1
      %p426 = por %p424, %p425
      %p427 = scmp.ne.s32.totalorder %s419, %s422
      %p428 = scmp.eq.s32.totalorder %s32, 0
      %p429 = por %p427, %p428
      %p430 = scmp.ne.s32.totalorder %s419, %s422
      %p431 = scmp.eq.s32.totalorder %s37, 1
      %p432 = por %p430, %p431
      %p433 = scmp.ne.s32.totalorder %s422, %s423
      %p434 = scmp.eq.s32.totalorder %s37, 0
      %p435 = por %p433, %p434
      %p436 = scmp.ne.s32.totalorder %s422, %s423
      %p437 = scmp.eq.s32.totalorder %s38, 1
      %p438 = por %p436, %p437
      %p440 = scmp.ne.s32.totalorder %s423, %s439
      %p441 = scmp.eq.s32.totalorder %s38, 0
      %p442 = por %p440, %p441
      %s443 = ssub.s32 %s32, %s39
      %p444 = scmp.eq.s32.totalorder %s443, 0
      %s446 = sadd.s32 %s445, 1
      %s447 = scalar_select %p444, %s445, %s446
      %p450 = pneg %p444
      %p451 = scmp.eq.s32.totalorder %s32, 1
      %p452 = por %p450, %p451
      %p453 = scmp.ne.s32.totalorder %s445, %s448
      %p454 = scmp.eq.s32.totalorder %s32, 0
      %p455 = por %p453, %p454
      %p456 = scmp.ne.s32.totalorder %s445, %s448
      %p457 = scmp.eq.s32.totalorder %s37, 1
      %p458 = por %p456, %p457
      %p459 = scmp.ne.s32.totalorder %s448, %s449
      %p460 = scmp.eq.s32.totalorder %s37, 0
      %p461 = por %p459, %p460
      %p462 = scmp.ne.s32.totalorder %s448, %s449
      %p463 = scmp.eq.s32.totalorder %s38, 1
      %p464 = por %p462, %p463
      %p466 = scmp.ne.s32.totalorder %s449, %s465
      %p467 = scmp.eq.s32.totalorder %s38, 0
      %p468 = por %p466, %p467
      %s469 = ssub.s32 %s32, %s39
      %p470 = scmp.eq.s32.totalorder %s469, 0
      %s472 = sadd.s32 %s471, 1
      %s473 = scalar_select %p470, %s471, %s472
      %p476 = pneg %p470
      %p477 = scmp.eq.s32.totalorder %s32, 1
      %p478 = por %p476, %p477
      %p479 = scmp.ne.s32.totalorder %s471, %s474
      %p480 = scmp.eq.s32.totalorder %s32, 0
      %p481 = por %p479, %p480
      %p482 = scmp.ne.s32.totalorder %s471, %s474
      %p483 = scmp.eq.s32.totalorder %s37, 1
      %p484 = por %p482, %p483
      %p485 = scmp.ne.s32.totalorder %s474, %s475
      %p486 = scmp.eq.s32.totalorder %s37, 0
      %p487 = por %p485, %p486
      %p488 = scmp.ne.s32.totalorder %s474, %s475
      %p489 = scmp.eq.s32.totalorder %s38, 1
      %p490 = por %p488, %p489
      %p492 = scmp.ne.s32.totalorder %s475, %s491
      %p493 = scmp.eq.s32.totalorder %s38, 0
      %p494 = por %p492, %p493
      %p495 = scmp.le.s32.totalorder 1, %s32
      %p496 = scmp.lt.s32.totalorder %s32, 3
      %p497 = pnand %p495, %p496
      %p498 = pneg %p497
      // Predicated region
      $region9: #{_bnn_forward.1} parent=5 // pred_check
        _
      $region10: #{_bnn_forward.1} parent=5 // pred_check_branch
        %500 = sbr.rel (%p497) target = $region12
      $region11: #{_bnn_forward.1} parent=5 // pred_region
        %s501 = ssub.s32 %s32, 1
        // Predicated region
        $region13: #{_bnn_forward.1} parent=11 // pred_check
          %p502 = pneg %p53
        $region14: #{_bnn_forward.1} parent=11 // pred_check_branch
          %504 = sbr.rel (%p502) target = $region16
        $region15: #{_bnn_forward.1} parent=11 // pred_region
          _
        $region16: #{_bnn_forward.1} parent=11 // pred_fallthru
          _
        // Predicated region
        $region17: #{_bnn_forward.1} parent=11 // pred_check
          %p505 = pneg %p74
        $region18: #{_bnn_forward.1} parent=11 // pred_check_branch
          %507 = sbr.rel (%p505) target = $region20
        $region19: #{_bnn_forward.1} parent=11 // pred_region
          _
        $region20: #{_bnn_forward.1} parent=11 // pred_fallthru
          _
        // Predicated region
        $region21: #{_bnn_forward.1} parent=11 // pred_check
          %p508 = pneg %p95
        $region22: #{_bnn_forward.1} parent=11 // pred_check_branch
          %510 = sbr.rel (%p508) target = $region24
        $region23: #{_bnn_forward.1} parent=11 // pred_region
          _
        $region24: #{_bnn_forward.1} parent=11 // pred_fallthru
          _
        // Predicated region
        $region25: #{_bnn_forward.1} parent=11 // pred_check
          %p511 = pneg %p116
        $region26: #{_bnn_forward.1} parent=11 // pred_check_branch
          %513 = sbr.rel (%p511) target = $region28
        $region27: #{_bnn_forward.1} parent=11 // pred_region
          _
        $region28: #{_bnn_forward.1} parent=11 // pred_fallthru
          _
        // Predicated region
        $region29: #{_bnn_forward.1} parent=11 // pred_check
          %p514 = pneg %p137
        $region30: #{_bnn_forward.1} parent=11 // pred_check_branch
          %516 = sbr.rel (%p514) target = $region32
        $region31: #{_bnn_forward.1} parent=11 // pred_region
          _
        $region32: #{_bnn_forward.1} parent=11 // pred_fallthru
          _
        // Predicated region
        $region33: #{_bnn_forward.1} parent=11 // pred_check
          %p517 = pneg %p210
        $region34: #{_bnn_forward.1} parent=11 // pred_check_branch
          %519 = sbr.rel (%p517) target = $region36
        $region35: #{_bnn_forward.1} parent=11 // pred_region
          _
        $region36: #{_bnn_forward.1} parent=11 // pred_fallthru
          _
        // Predicated region
        $region37: #{_bnn_forward.1} parent=11 // pred_check
          %p520 = pneg %p231
        $region38: #{_bnn_forward.1} parent=11 // pred_check_branch
          %522 = sbr.rel (%p520) target = $region40
        $region39: #{_bnn_forward.1} parent=11 // pred_region
          _
        $region40: #{_bnn_forward.1} parent=11 // pred_fallthru
          _
        // Predicated region
        $region41: #{_bnn_forward.1} parent=11 // pred_check
          %p523 = pneg %p252
        $region42: #{_bnn_forward.1} parent=11 // pred_check_branch
          %525 = sbr.rel (%p523) target = $region44
        $region43: #{_bnn_forward.1} parent=11 // pred_region
          _
        $region44: #{_bnn_forward.1} parent=11 // pred_fallthru
          _
        // Predicated region
        $region45: #{_bnn_forward.1} parent=11 // pred_check
          %p526 = pneg %p273
        $region46: #{_bnn_forward.1} parent=11 // pred_check_branch
          %528 = sbr.rel (%p526) target = $region48
        $region47: #{_bnn_forward.1} parent=11 // pred_region
          _
        $region48: #{_bnn_forward.1} parent=11 // pred_fallthru
          _
        // Predicated region
        $region49: #{_bnn_forward.1} parent=11 // pred_check
          %p529 = pneg %p346
        $region50: #{_bnn_forward.1} parent=11 // pred_check_branch
          %531 = sbr.rel (%p529) target = $region52
        $region51: #{_bnn_forward.1} parent=11 // pred_region
          _
        $region52: #{_bnn_forward.1} parent=11 // pred_fallthru
          _
        // Predicated region
        $region53: #{_bnn_forward.1} parent=11 // pred_check
          %p532 = pneg %p367
        $region54: #{_bnn_forward.1} parent=11 // pred_check_branch
          %534 = sbr.rel (%p532) target = $region56
        $region55: #{_bnn_forward.1} parent=11 // pred_region
          _
        $region56: #{_bnn_forward.1} parent=11 // pred_fallthru
          _
        // Predicated region
        $region57: #{_bnn_forward.1} parent=11 // pred_check
          %p535 = pneg %p388
        $region58: #{_bnn_forward.1} parent=11 // pred_check_branch
          %537 = sbr.rel (%p535) target = $region60
        $region59: #{_bnn_forward.1} parent=11 // pred_region
          _
        $region60: #{_bnn_forward.1} parent=11 // pred_fallthru
          _
        // Predicated region
        $region61: #{_bnn_forward.1} parent=11 // pred_check
          %p538 = pneg %p409
        $region62: #{_bnn_forward.1} parent=11 // pred_check_branch
          %540 = sbr.rel (%p538) target = $region64
        $region63: #{_bnn_forward.1} parent=11 // pred_region
          _
        $region64: #{_bnn_forward.1} parent=11 // pred_fallthru
          _
      $region12: #{_bnn_forward.1} parent=5 // pred_fallthru
        _
      %p541 = scmp.lt.s32.totalorder %s32, 2
      // Predicated region
      $region65: #{_bnn_forward.1} parent=5 // pred_check
        %p542 = pneg %p541
      $region66: #{_bnn_forward.1} parent=5 // pred_check_branch
        %544 = sbr.rel (%p542) target = $region68
      $region67: #{_bnn_forward.1} parent=5 // pred_region
        // Predicated region
        $region69: #{_bnn_forward.1} parent=67 // pred_check
          %p545 = pneg %p157
        $region70: #{_bnn_forward.1} parent=67 // pred_check_branch
          %547 = sbr.rel (%p545) target = $region72
        $region71: #{_bnn_forward.1} parent=67 // pred_region
          %s548 = smul.u32 2, %s32
          %p549 = scmp.lt.s32.totalorder %s548, 3
          %s550 = scalar_select %p549, %s548, 3
          %s551 = smul.addr %s550, 4
          %s552 = smul.addr %s551, 8
          %s553 = scalar_lea.vmem %s5, %s552
          %s554 = smul.u32 2, %s32
        $region72: #{_bnn_forward.1} parent=67 // pred_fallthru
          _
        // Predicated region
        $region73: #{_bnn_forward.1} parent=67 // pred_check
          %p555 = pneg %p183
        $region74: #{_bnn_forward.1} parent=67 // pred_check_branch
          %557 = sbr.rel (%p555) target = $region76
        $region75: #{_bnn_forward.1} parent=67 // pred_region
          %s558 = smul.u32 2, %s32
          %p559 = scmp.lt.s32.totalorder %s558, 3
          %s560 = scalar_select %p559, %s558, 3
          %s561 = smul.addr %s560, 4
          %s562 = smul.addr %s561, 8
          %s563 = scalar_lea.vmem %s6, %s562
          %s564 = smul.u32 2, %s32
        $region76: #{_bnn_forward.1} parent=67 // pred_fallthru
          _
        // Predicated region
        $region77: #{_bnn_forward.1} parent=67 // pred_check
          %p565 = pneg %p293
        $region78: #{_bnn_forward.1} parent=67 // pred_check_branch
          %567 = sbr.rel (%p565) target = $region80
        $region79: #{_bnn_forward.1} parent=67 // pred_region
          %s568 = smul.u32 2, %s32
          %p569 = scmp.lt.s32.totalorder %s568, 3
          %s570 = scalar_select %p569, %s568, 3
          %s571 = smul.addr %s570, 4
          %s572 = smul.addr %s571, 8
          %s573 = scalar_lea.vmem %s11, %s572
          %s574 = smul.u32 2, %s32
        $region80: #{_bnn_forward.1} parent=67 // pred_fallthru
          _
        // Predicated region
        $region81: #{_bnn_forward.1} parent=67 // pred_check
          %p575 = pneg %p319
        $region82: #{_bnn_forward.1} parent=67 // pred_check_branch
          %577 = sbr.rel (%p575) target = $region84
        $region83: #{_bnn_forward.1} parent=67 // pred_region
          %s578 = smul.u32 2, %s32
          %p579 = scmp.lt.s32.totalorder %s578, 3
          %s580 = scalar_select %p579, %s578, 3
          %s581 = smul.addr %s580, 4
          %s582 = smul.addr %s581, 8
          %s583 = scalar_lea.vmem %s12, %s582
          %s584 = smul.u32 2, %s32
        $region84: #{_bnn_forward.1} parent=67 // pred_fallthru
          _
        // Predicated region
        $region85: #{_bnn_forward.1} parent=67 // pred_check
          %p585 = pneg %p429
        $region86: #{_bnn_forward.1} parent=67 // pred_check_branch
          %587 = sbr.rel (%p585) target = $region88
        $region87: #{_bnn_forward.1} parent=67 // pred_region
          %s588 = smul.u32 2, %s32
          %p589 = scmp.lt.s32.totalorder %s588, 3
          %s590 = scalar_select %p589, %s588, 3
          %s591 = scalar_lea.vmem %s17, %s590
          %s592 = smul.u32 2, %s32
        $region88: #{_bnn_forward.1} parent=67 // pred_fallthru
          _
        // Predicated region
        $region89: #{_bnn_forward.1} parent=67 // pred_check
          %p593 = pneg %p455
        $region90: #{_bnn_forward.1} parent=67 // pred_check_branch
          %595 = sbr.rel (%p593) target = $region92
        $region91: #{_bnn_forward.1} parent=67 // pred_region
          %s596 = smul.u32 2, %s32
          %p597 = scmp.lt.s32.totalorder %s596, 3
          %s598 = scalar_select %p597, %s596, 3
          %s599 = scalar_lea.vmem %s18, %s598
          %s600 = smul.u32 2, %s32
        $region92: #{_bnn_forward.1} parent=67 // pred_fallthru
          _
      $region68: #{_bnn_forward.1} parent=5 // pred_fallthru
        _
      %p601 = scmp.le.s32.totalorder 1, %s32
      %p602 = scmp.lt.s32.totalorder %s32, 3
      %p603 = pnand %p601, %p602
      %p604 = pneg %p603
      // Predicated region
      $region93: #{_bnn_forward.1} parent=5 // pred_check
        _
      $region94: #{_bnn_forward.1} parent=5 // pred_check_branch
        %606 = sbr.rel (%p603) target = $region96
      $region95: #{_bnn_forward.1} parent=5 // pred_region
        %s607 = ssub.s32 %s32, 1
        %p608 = pneg %p53
        %p609 = pneg %p50
        %p610 = pneg %p74
        %p611 = pneg %p71
        %p612 = pneg %p95
        %p613 = pneg %p92
        %p614 = pneg %p116
        %p615 = pneg %p113
        %p616 = pneg %p137
        %p617 = pneg %p134
        %s618 = smul.u32 2, %s37
        %p619 = scmp.lt.s32.totalorder %s618, 3
        %s620 = scalar_select %p619, %s618, 3
        %s621 = smul.addr %s620, 4
        %s622 = smul.addr %s621, 8
        %s623 = scalar_lea.vmem %s5, %s622
        %p624 = pneg %p163
        %p625 = pneg %p160
        %s626 = smul.u32 2, %s37
        %p627 = scmp.lt.s32.totalorder %s626, 3
        %s628 = scalar_select %p627, %s626, 3
        %s629 = smul.addr %s628, 4
        %s630 = smul.addr %s629, 8
        %s631 = scalar_lea.vmem %s6, %s630
        %p632 = pneg %p189
        %p633 = pneg %p186
        %p634 = pneg %p210
        %p635 = pneg %p207
        %p636 = pneg %p231
        %p637 = pneg %p228
        %p638 = pneg %p252
        %p639 = pneg %p249
        %p640 = pneg %p273
        %p641 = pneg %p270
        %s642 = smul.u32 2, %s37
        %p643 = scmp.lt.s32.totalorder %s642, 3
        %s644 = scalar_select %p643, %s642, 3
        %s645 = smul.addr %s644, 4
        %s646 = smul.addr %s645, 8
        %s647 = scalar_lea.vmem %s11, %s646
        %p648 = pneg %p299
        %p649 = pneg %p296
        %s650 = smul.u32 2, %s37
        %p651 = scmp.lt.s32.totalorder %s650, 3
        %s652 = scalar_select %p651, %s650, 3
        %s653 = smul.addr %s652, 4
        %s654 = smul.addr %s653, 8
        %s655 = scalar_lea.vmem %s12, %s654
        %p656 = pneg %p325
        %p657 = pneg %p322
        %p658 = pneg %p346
        %p659 = pneg %p343
        %p660 = pneg %p367
        %p661 = pneg %p364
        %p662 = pneg %p388
        %p663 = pneg %p385
        %p664 = pneg %p409
        %p665 = pneg %p406
        %s666 = smul.u32 2, %s37
        %p667 = scmp.lt.s32.totalorder %s666, 3
        %s668 = scalar_select %p667, %s666, 3
        %s669 = scalar_lea.vmem %s17, %s668
        %p670 = pneg %p435
        %p671 = pneg %p432
        %s672 = smul.u32 2, %s37
        %p673 = scmp.lt.s32.totalorder %s672, 3
        %s674 = scalar_select %p673, %s672, 3
        %s675 = scalar_lea.vmem %s18, %s674
        %p676 = pneg %p461
        %p677 = pneg %p458
        %p678 = pneg %p487
        %p679 = pneg %p484
        %s680 = sand.u32 %s474, 1
        %s681 = scalar_lea.sflag [#allocation5], %s680
        %s682 = sand.u32 %s474, 1
        %s683 = smul.addr %s682, 2
        %s684 = scalar_lea.vmem [#allocation4], %s683
        %s685 = smul.u32 2, %s37
        %p686 = scmp.lt.s32.totalorder %s685, 3
        %s687 = scalar_select %p686, %s685, 3
        %s688 = smul.addr %s687, 4
        %s689 = smul.addr %s688, 8
        %s690 = scalar_lea.vmem %s5, %s689
        %s691 = smul.u32 2, %s37
        %s692 = smul.u32 2, %s37
        %p693 = scmp.lt.s32.totalorder %s692, 3
        %s694 = scalar_select %p693, %s692, 3
        %s695 = smul.addr %s694, 4
        %s696 = smul.addr %s695, 8
        %s697 = scalar_lea.vmem %s6, %s696
        %s698 = smul.u32 2, %s37
        %s699 = smul.u32 2, %s37
        %p700 = scmp.lt.s32.totalorder %s699, 3
        %s701 = scalar_select %p700, %s699, 3
        %s702 = smul.addr %s701, 4
        %s703 = smul.addr %s702, 8
        %s704 = scalar_lea.vmem %s11, %s703
        %s705 = smul.u32 2, %s37
        %s706 = smul.u32 2, %s37
        %p707 = scmp.lt.s32.totalorder %s706, 3
        %s708 = scalar_select %p707, %s706, 3
        %s709 = smul.addr %s708, 4
        %s710 = smul.addr %s709, 8
        %s711 = scalar_lea.vmem %s12, %s710
        %s712 = smul.u32 2, %s37
        %s713 = smul.u32 2, %s37
        %p714 = scmp.lt.s32.totalorder %s713, 3
        %s715 = scalar_select %p714, %s713, 3
        %s716 = scalar_lea.vmem %s17, %s715
        %s717 = smul.u32 2, %s37
        %s718 = smul.u32 2, %s37
        %p719 = scmp.lt.s32.totalorder %s718, 3
        %s720 = scalar_select %p719, %s718, 3
        %s721 = scalar_lea.vmem %s18, %s720
        %s722 = smul.u32 2, %s37
        %v723 = vld [vmem:[%s0] sm:$0xf]
        %v724 = vld [vmem:[%s1] sm:$0xff]
        %v725 = vld [vmem:[%s1 + $0x8] sm:$0xff]
        %v726 = vld [vmem:[%s1 + $0x10] sm:$0xff]
        %v727 = vld [vmem:[%s1 + $0x18] sm:$0xff]
        %v728 = vld [vmem:[%s2] sm:$0xff]
        %v729 = vld [vmem:[%s2 + $0x8] sm:$0xff]
        %v730 = vld [vmem:[%s2 + $0x10] sm:$0xff]
        %v731 = vld [vmem:[%s2 + $0x18] sm:$0xff]
        %v732 = vld [vmem:[%s690] sm:$0xff]
        %v733 = vld [vmem:[%s690 + $0x8] sm:$0xff]
        %v734 = vld [vmem:[%s690 + $0x10] sm:$0xff]
        %v735 = vld [vmem:[%s690 + $0x18] sm:$0xff]
        %v736 = vmul.f32 %v728, %v732
        %v737 = vmul.f32 %v729, %v733
        %v738 = vmul.f32 %v730, %v734
        %v739 = vmul.f32 %v731, %v735
        %v740 = vadd.f32 %v724, %v736
        %v741 = vadd.f32 %v725, %v737
        %v742 = vadd.f32 %v726, %v738
        %v743 = vadd.f32 %v727, %v739
        %v744 = vld [vmem:[%s3] sm:$0xff]
        %v745 = vld [vmem:[%s3 + $0x8] sm:$0xff]
        %v746 = vld [vmem:[%s3 + $0x10] sm:$0xff]
        %v747 = vld [vmem:[%s3 + $0x18] sm:$0xff]
        %v748 = vld [vmem:[%s4] sm:$0xff]
        %v749 = vld [vmem:[%s4 + $0x8] sm:$0xff]
        %v750 = vld [vmem:[%s4 + $0x10] sm:$0xff]
        %v751 = vld [vmem:[%s4 + $0x18] sm:$0xff]
        %v752 = vld [vmem:[%s697] sm:$0xff]
        %v753 = vld [vmem:[%s697 + $0x8] sm:$0xff]
        %v754 = vld [vmem:[%s697 + $0x10] sm:$0xff]
        %v755 = vld [vmem:[%s697 + $0x18] sm:$0xff]
        %v756 = vmul.f32 %v748, %v752
        %v757 = vmul.f32 %v749, %v753
        %v758 = vmul.f32 %v750, %v754
        %v759 = vmul.f32 %v751, %v755
        %v760 = vadd.f32 %v744, %v756
        %v761 = vadd.f32 %v745, %v757
        %v762 = vadd.f32 %v746, %v758
        %v763 = vadd.f32 %v747, %v759
        %765 = vset.pattern.permute.xlu0 0
        %766 = vperm.xlu0 %765, %v760
        %v767 = vpop.permute.xlu0 %766
        %770 = vset.pattern.permute.xlu0 0
        %771 = vperm.xlu0 %770, %v761
        %v772 = vpop.permute.xlu0 %771
        %775 = vset.pattern.permute.xlu0 0
        %776 = vperm.xlu0 %775, %v762
        %v777 = vpop.permute.xlu0 %776
        %780 = vset.pattern.permute.xlu0 0
        %781 = vperm.xlu0 %780, %v763
        %v782 = vpop.permute.xlu0 %781
        %vm784 = vcmask 31744
        %v786 = vsel %vm784, %v740, 0
        %v789 = vsel %vm784, %v741, 0
        %v792 = vsel %vm784, %v742, 0
        %v795 = vsel %vm784, %v743, 0
        %vm797 = vcmask 1043456
        %v799 = vsel %vm797, %v723, 0
        %801 = vmatpush.msra.mxu0 0.0
        %802 = vmatpush.msra.mxu0 0.0
        %803 = vmatpush.msra.mxu0 0.0
        %804 = vmatpush.msra.mxu0 0.0
        %805 = vmatpush.msra.mxu0 0.0
        %806 = vmatpush.msra.mxu0 0.0
        %807 = vmatpush.msra.mxu0 0.0
        %808 = vmatpush.msra.mxu0 0.0
        %809 = vmatpush.msra.mxu0 0.0
        %810 = vmatpush.msra.mxu0 0.0
        %811 = vmatpush.msra.mxu0 0.0
        %812 = vmatpush.msra.mxu0 0.0
        %813 = vmatpush.msra.mxu0 0.0
        %814 = vmatpush.msra.mxu0 0.0
        %815 = vmatpush.msra.mxu0 0.0
        %816 = vmatpush.msra.mxu0 %v799
        %817 = vmatmul.f32.gmra.mxu0 %v786
        %v818 = vpop.f32.mrf.mxu0
        %v819 = vadd.f32 %v767, %v818
        %820 = vmatmul.f32.gmra.mxu0 %v789
        %v821 = vpop.f32.mrf.mxu0
        %v822 = vadd.f32 %v772, %v821
        %823 = vmatmul.f32.gmra.mxu0 %v792
        %v824 = vpop.f32.mrf.mxu0
        %v825 = vadd.f32 %v777, %v824
        %826 = vmatmul.f32.gmra.mxu0 %v795
        %v827 = vpop.f32.mrf.mxu0
        %v828 = vadd.f32 %v782, %v827
        %829 = vdwg.mxu0
        %v830 = vmax.f32 %v819, 0.0
        %v831 = vmax.f32 %v822, 0.0
        %v832 = vmax.f32 %v825, 0.0
        %v833 = vmax.f32 %v828, 0.0
        %v834 = vld [vmem:[%s7] sm:$0xff]
        %v835 = vld [vmem:[%s7 + $0x8] sm:$0xff]
        %v836 = vld [vmem:[%s7 + $0x10] sm:$0xff]
        %v837 = vld [vmem:[%s7 + $0x18] sm:$0xff]
        %v838 = vld [vmem:[%s8] sm:$0xff]
        %v839 = vld [vmem:[%s8 + $0x8] sm:$0xff]
        %v840 = vld [vmem:[%s8 + $0x10] sm:$0xff]
        %v841 = vld [vmem:[%s8 + $0x18] sm:$0xff]
        %v842 = vld [vmem:[%s704] sm:$0xff]
        %v843 = vld [vmem:[%s704 + $0x8] sm:$0xff]
        %v844 = vld [vmem:[%s704 + $0x10] sm:$0xff]
        %v845 = vld [vmem:[%s704 + $0x18] sm:$0xff]
        %v846 = vmul.f32 %v838, %v842
        %v847 = vmul.f32 %v839, %v843
        %v848 = vmul.f32 %v840, %v844
        %v849 = vmul.f32 %v841, %v845
        %v850 = vadd.f32 %v834, %v846
        %v851 = vadd.f32 %v835, %v847
        %v852 = vadd.f32 %v836, %v848
        %v853 = vadd.f32 %v837, %v849
        %v854 = vld [vmem:[%s9] sm:$0xff]
        %v855 = vld [vmem:[%s9 + $0x8] sm:$0xff]
        %v856 = vld [vmem:[%s9 + $0x10] sm:$0xff]
        %v857 = vld [vmem:[%s9 + $0x18] sm:$0xff]
        %v858 = vld [vmem:[%s10] sm:$0xff]
        %v859 = vld [vmem:[%s10 + $0x8] sm:$0xff]
        %v860 = vld [vmem:[%s10 + $0x10] sm:$0xff]
        %v861 = vld [vmem:[%s10 + $0x18] sm:$0xff]
        %v862 = vld [vmem:[%s711] sm:$0xff]
        %v863 = vld [vmem:[%s711 + $0x8] sm:$0xff]
        %v864 = vld [vmem:[%s711 + $0x10] sm:$0xff]
        %v865 = vld [vmem:[%s711 + $0x18] sm:$0xff]
        %v866 = vmul.f32 %v858, %v862
        %v867 = vmul.f32 %v859, %v863
        %v868 = vmul.f32 %v860, %v864
        %v869 = vmul.f32 %v861, %v865
        %v870 = vadd.f32 %v854, %v866
        %v871 = vadd.f32 %v855, %v867
        %v872 = vadd.f32 %v856, %v868
        %v873 = vadd.f32 %v857, %v869
        %875 = vset.pattern.permute.xlu0 0
        %876 = vperm.xlu0 %875, %v870
        %v877 = vpop.permute.xlu0 %876
        %880 = vset.pattern.permute.xlu0 0
        %881 = vperm.xlu0 %880, %v871
        %v882 = vpop.permute.xlu0 %881
        %885 = vset.pattern.permute.xlu0 0
        %886 = vperm.xlu0 %885, %v872
        %v887 = vpop.permute.xlu0 %886
        %890 = vset.pattern.permute.xlu0 0
        %891 = vperm.xlu0 %890, %v873
        %v892 = vpop.permute.xlu0 %891
        %vm894 = vcmask 261120
        %v896 = vsel %vm894, %v850, 0
        %v899 = vsel %vm894, %v851, 0
        %v902 = vsel %vm894, %v852, 0
        %v905 = vsel %vm894, %v853, 0
        %907 = vmatpush.msra.mxu0 0.0
        %908 = vmatpush.msra.mxu0 0.0
        %909 = vmatpush.msra.mxu0 0.0
        %910 = vmatpush.msra.mxu0 0.0
        %911 = vmatpush.msra.mxu0 0.0
        %912 = vmatpush.msra.mxu0 0.0
        %913 = vmatpush.msra.mxu0 0.0
        %914 = vmatpush.msra.mxu0 0.0
        %915 = vmatpush.msra.mxu0 0.0
        %916 = vmatpush.msra.mxu0 0.0
        %917 = vmatpush.msra.mxu0 0.0
        %918 = vmatpush.msra.mxu0 0.0
        %919 = vmatpush.msra.mxu0 %v833
        %920 = vmatpush.msra.mxu0 %v832
        %921 = vmatpush.msra.mxu0 %v831
        %922 = vmatpush.msra.mxu0 %v830
        %923 = vmatmul.f32.gmra.mxu0 %v896
        %v924 = vpop.f32.mrf.mxu0
        %v925 = vadd.f32 %v877, %v924
        %926 = vmatmul.f32.gmra.mxu0 %v899
        %v927 = vpop.f32.mrf.mxu0
        %v928 = vadd.f32 %v882, %v927
        %929 = vmatmul.f32.gmra.mxu0 %v902
        %v930 = vpop.f32.mrf.mxu0
        %v931 = vadd.f32 %v887, %v930
        %932 = vmatmul.f32.gmra.mxu0 %v905
        %v933 = vpop.f32.mrf.mxu0
        %v934 = vadd.f32 %v892, %v933
        %935 = vdwg.mxu0
        %v936 = vmax.f32 %v925, 0.0
        %v937 = vmax.f32 %v928, 0.0
        %v938 = vmax.f32 %v931, 0.0
        %v939 = vmax.f32 %v934, 0.0
        %v940 = vld [vmem:[%s13] sm:$0x1]
        %v941 = vld [vmem:[%s14] sm:$0x1]
        %v942 = vld [vmem:[%s716] sm:$0x1]
        %v943 = vmul.f32 %v941, %v942
        %v944 = vadd.f32 %v940, %v943
        %v945 = vld [vmem:[#allocation2] sm:$0x1]
        %v946 = vld [vmem:[#allocation3] sm:$0x1]
        %v947 = vld [vmem:[%s721] sm:$0x1]
        %v948 = vmul.f32 %v946, %v947
        %v949 = vadd.f32 %v945, %v948
        %951 = vset.pattern.permute.xlu0 0
        %952 = vperm.xlu0 %951, %v949
        %v953 = vpop.permute.xlu0 %952
        %v955 = vperm.slane %v953, 0
        %v957 = vsel %vm894, %v944, 0
        %959 = vmatpush.msra.mxu0 0.0
        %960 = vmatpush.msra.mxu0 0.0
        %961 = vmatpush.msra.mxu0 0.0
        %962 = vmatpush.msra.mxu0 0.0
        %963 = vmatpush.msra.mxu0 0.0
        %964 = vmatpush.msra.mxu0 0.0
        %965 = vmatpush.msra.mxu0 0.0
        %966 = vmatpush.msra.mxu0 0.0
        %967 = vmatpush.msra.mxu0 0.0
        %968 = vmatpush.msra.mxu0 0.0
        %969 = vmatpush.msra.mxu0 0.0
        %970 = vmatpush.msra.mxu0 0.0
        %971 = vmatpush.msra.mxu0 %v939
        %972 = vmatpush.msra.mxu0 %v938
        %973 = vmatpush.msra.mxu0 %v937
        %974 = vmatpush.msra.mxu0 %v936
        %975 = vmatmul.f32.gmra.mxu0 %v957
        %v976 = vpop.f32.mrf.mxu0
        %v977 = vadd.f32 %v955, %v976
        %978 = vdwg.mxu0
        %s979 = scalar_lea.vmem %s690, 32
        %v980 = vld [vmem:[%s979] sm:$0xff]
        %v981 = vld [vmem:[%s979 + $0x8] sm:$0xff]
        %v982 = vld [vmem:[%s979 + $0x10] sm:$0xff]
        %v983 = vld [vmem:[%s979 + $0x18] sm:$0xff]
        %v984 = vmul.f32 %v728, %v980
        %v985 = vmul.f32 %v729, %v981
        %v986 = vmul.f32 %v730, %v982
        %v987 = vmul.f32 %v731, %v983
        %v988 = vadd.f32 %v724, %v984
        %v989 = vadd.f32 %v725, %v985
        %v990 = vadd.f32 %v726, %v986
        %v991 = vadd.f32 %v727, %v987
        %s992 = scalar_lea.vmem %s697, 32
        %v993 = vld [vmem:[%s992] sm:$0xff]
        %v994 = vld [vmem:[%s992 + $0x8] sm:$0xff]
        %v995 = vld [vmem:[%s992 + $0x10] sm:$0xff]
        %v996 = vld [vmem:[%s992 + $0x18] sm:$0xff]
        %v997 = vmul.f32 %v748, %v993
        %v998 = vmul.f32 %v749, %v994
        %v999 = vmul.f32 %v750, %v995
        %v1000 = vmul.f32 %v751, %v996
        %v1001 = vadd.f32 %v744, %v997
        %v1002 = vadd.f32 %v745, %v998
        %v1003 = vadd.f32 %v746, %v999
        %v1004 = vadd.f32 %v747, %v1000
        %1006 = vset.pattern.permute.xlu0 0
        %1007 = vperm.xlu0 %1006, %v1001
        %v1008 = vpop.permute.xlu0 %1007
        %1011 = vset.pattern.permute.xlu0 0
        %1012 = vperm.xlu0 %1011, %v1002
        %v1013 = vpop.permute.xlu0 %1012
        %1016 = vset.pattern.permute.xlu0 0
        %1017 = vperm.xlu0 %1016, %v1003
        %v1018 = vpop.permute.xlu0 %1017
        %1021 = vset.pattern.permute.xlu0 0
        %1022 = vperm.xlu0 %1021, %v1004
        %v1023 = vpop.permute.xlu0 %1022
        %v1026 = vsel %vm784, %v988, 0
        %v1029 = vsel %vm784, %v989, 0
        %v1032 = vsel %vm784, %v990, 0
        %v1035 = vsel %vm784, %v991, 0
        %1037 = vmatpush.msra.mxu0 0.0
        %1038 = vmatpush.msra.mxu0 0.0
        %1039 = vmatpush.msra.mxu0 0.0
        %1040 = vmatpush.msra.mxu0 0.0
        %1041 = vmatpush.msra.mxu0 0.0
        %1042 = vmatpush.msra.mxu0 0.0
        %1043 = vmatpush.msra.mxu0 0.0
        %1044 = vmatpush.msra.mxu0 0.0
        %1045 = vmatpush.msra.mxu0 0.0
        %1046 = vmatpush.msra.mxu0 0.0
        %1047 = vmatpush.msra.mxu0 0.0
        %1048 = vmatpush.msra.mxu0 0.0
        %1049 = vmatpush.msra.mxu0 0.0
        %1050 = vmatpush.msra.mxu0 0.0
        %1051 = vmatpush.msra.mxu0 0.0
        %1052 = vmatpush.msra.mxu0 %v799
        %1053 = vmatmul.f32.gmra.mxu0 %v1026
        %v1054 = vpop.f32.mrf.mxu0
        %v1055 = vadd.f32 %v1008, %v1054
        %1056 = vmatmul.f32.gmra.mxu0 %v1029
        %v1057 = vpop.f32.mrf.mxu0
        %v1058 = vadd.f32 %v1013, %v1057
        %1059 = vmatmul.f32.gmra.mxu0 %v1032
        %v1060 = vpop.f32.mrf.mxu0
        %v1061 = vadd.f32 %v1018, %v1060
        %1062 = vmatmul.f32.gmra.mxu0 %v1035
        %v1063 = vpop.f32.mrf.mxu0
        %v1064 = vadd.f32 %v1023, %v1063
        %1065 = vdwg.mxu0
        %v1066 = vmax.f32 %v1055, 0.0
        %v1067 = vmax.f32 %v1058, 0.0
        %v1068 = vmax.f32 %v1061, 0.0
        %v1069 = vmax.f32 %v1064, 0.0
        %s1070 = scalar_lea.vmem %s704, 32
        %v1071 = vld [vmem:[%s1070] sm:$0xff]
        %v1072 = vld [vmem:[%s1070 + $0x8] sm:$0xff]
        %v1073 = vld [vmem:[%s1070 + $0x10] sm:$0xff]
        %v1074 = vld [vmem:[%s1070 + $0x18] sm:$0xff]
        %v1075 = vmul.f32 %v838, %v1071
        %v1076 = vmul.f32 %v839, %v1072
        %v1077 = vmul.f32 %v840, %v1073
        %v1078 = vmul.f32 %v841, %v1074
        %v1079 = vadd.f32 %v834, %v1075
        %v1080 = vadd.f32 %v835, %v1076
        %v1081 = vadd.f32 %v836, %v1077
        %v1082 = vadd.f32 %v837, %v1078
        %s1083 = scalar_lea.vmem %s711, 32
        %v1084 = vld [vmem:[%s1083] sm:$0xff]
        %v1085 = vld [vmem:[%s1083 + $0x8] sm:$0xff]
        %v1086 = vld [vmem:[%s1083 + $0x10] sm:$0xff]
        %v1087 = vld [vmem:[%s1083 + $0x18] sm:$0xff]
        %v1088 = vmul.f32 %v858, %v1084
        %v1089 = vmul.f32 %v859, %v1085
        %v1090 = vmul.f32 %v860, %v1086
        %v1091 = vmul.f32 %v861, %v1087
        %v1092 = vadd.f32 %v854, %v1088
        %v1093 = vadd.f32 %v855, %v1089
        %v1094 = vadd.f32 %v856, %v1090
        %v1095 = vadd.f32 %v857, %v1091
        %1097 = vset.pattern.permute.xlu0 0
        %1098 = vperm.xlu0 %1097, %v1092
        %v1099 = vpop.permute.xlu0 %1098
        %1102 = vset.pattern.permute.xlu0 0
        %1103 = vperm.xlu0 %1102, %v1093
        %v1104 = vpop.permute.xlu0 %1103
        %1107 = vset.pattern.permute.xlu0 0
        %1108 = vperm.xlu0 %1107, %v1094
        %v1109 = vpop.permute.xlu0 %1108
        %1112 = vset.pattern.permute.xlu0 0
        %1113 = vperm.xlu0 %1112, %v1095
        %v1114 = vpop.permute.xlu0 %1113
        %v1117 = vsel %vm894, %v1079, 0
        %v1120 = vsel %vm894, %v1080, 0
        %v1123 = vsel %vm894, %v1081, 0
        %v1126 = vsel %vm894, %v1082, 0
        %1128 = vmatpush.msra.mxu0 0.0
        %1129 = vmatpush.msra.mxu0 0.0
        %1130 = vmatpush.msra.mxu0 0.0
        %1131 = vmatpush.msra.mxu0 0.0
        %1132 = vmatpush.msra.mxu0 0.0
        %1133 = vmatpush.msra.mxu0 0.0
        %1134 = vmatpush.msra.mxu0 0.0
        %1135 = vmatpush.msra.mxu0 0.0
        %1136 = vmatpush.msra.mxu0 0.0
        %1137 = vmatpush.msra.mxu0 0.0
        %1138 = vmatpush.msra.mxu0 0.0
        %1139 = vmatpush.msra.mxu0 0.0
        %1140 = vmatpush.msra.mxu0 %v1069
        %1141 = vmatpush.msra.mxu0 %v1068
        %1142 = vmatpush.msra.mxu0 %v1067
        %1143 = vmatpush.msra.mxu0 %v1066
        %1144 = vmatmul.f32.gmra.mxu0 %v1117
        %v1145 = vpop.f32.mrf.mxu0
        %v1146 = vadd.f32 %v1099, %v1145
        %1147 = vmatmul.f32.gmra.mxu0 %v1120
        %v1148 = vpop.f32.mrf.mxu0
        %v1149 = vadd.f32 %v1104, %v1148
        %1150 = vmatmul.f32.gmra.mxu0 %v1123
        %v1151 = vpop.f32.mrf.mxu0
        %v1152 = vadd.f32 %v1109, %v1151
        %1153 = vmatmul.f32.gmra.mxu0 %v1126
        %v1154 = vpop.f32.mrf.mxu0
        %v1155 = vadd.f32 %v1114, %v1154
        %1156 = vdwg.mxu0
        %v1157 = vmax.f32 %v1146, 0.0
        %v1158 = vmax.f32 %v1149, 0.0
        %v1159 = vmax.f32 %v1152, 0.0
        %v1160 = vmax.f32 %v1155, 0.0
        %s1161 = scalar_lea.vmem %s716, 1
        %v1162 = vld [vmem:[%s1161] sm:$0x1]
        %v1163 = vmul.f32 %v941, %v1162
        %v1164 = vadd.f32 %v940, %v1163
        %s1165 = scalar_lea.vmem %s721, 1
        %v1166 = vld [vmem:[%s1165] sm:$0x1]
        %v1167 = vmul.f32 %v946, %v1166
        %v1168 = vadd.f32 %v945, %v1167
        %1170 = vset.pattern.permute.xlu0 0
        %1171 = vperm.xlu0 %1170, %v1168
        %v1172 = vpop.permute.xlu0 %1171
        %v1174 = vperm.slane %v1172, 0
        %v1176 = vsel %vm894, %v1164, 0
        %1178 = vmatpush.msra.mxu0 0.0
        %1179 = vmatpush.msra.mxu0 0.0
        %1180 = vmatpush.msra.mxu0 0.0
        %1181 = vmatpush.msra.mxu0 0.0
        %1182 = vmatpush.msra.mxu0 0.0
        %1183 = vmatpush.msra.mxu0 0.0
        %1184 = vmatpush.msra.mxu0 0.0
        %1185 = vmatpush.msra.mxu0 0.0
        %1186 = vmatpush.msra.mxu0 0.0
        %1187 = vmatpush.msra.mxu0 0.0
        %1188 = vmatpush.msra.mxu0 0.0
        %1189 = vmatpush.msra.mxu0 0.0
        %1190 = vmatpush.msra.mxu0 %v1160
        %1191 = vmatpush.msra.mxu0 %v1159
        %1192 = vmatpush.msra.mxu0 %v1158
        %1193 = vmatpush.msra.mxu0 %v1157
        %1194 = vmatmul.f32.gmra.mxu0 %v1176
        %v1195 = vpop.f32.mrf.mxu0
        %v1196 = vadd.f32 %v1174, %v1195
        %1197 = vdwg.mxu0
        %v1199 = vrot.slane %v1196, 7
        %vm1201 = vcmask 1040384
        %v1202 = vsel %vm1201, %v977, %v1199
        %vm1203 = vcmask 58368
        %1204 = vst.msk [vmem:[%s684] sm:$0x3] %vm1203, %v1202
        %s1205 = sand.u32 %s474, 1
        %s1206 = scalar_lea.sflag [#allocation5], %s1205
        %s1207 = sand.u32 %s474, 1
        %s1208 = smul.addr %s1207, 2
        %s1209 = scalar_lea.vmem [#allocation4], %s1208
        // Predicated region
        $region97: #{_bnn_forward.1} parent=95 // pred_check
          %p1210 = pneg %p484
        $region98: #{_bnn_forward.1} parent=95 // pred_check_branch
          %1212 = sbr.rel (%p1210) target = $region100
        $region99: #{_bnn_forward.1} parent=95 // pred_region
          %1214 = vsyncadd %s1206, 0
          %s1215 = smul.addr %s37, 2
          %s1216 = scalar_lea.hbm %s19, %s1215
          %s1218 = sshll.u32 %s1209, 4
          %s1219 = int_to_ptr.vmem [resolvable:$true] %s1218
          %s1220 = sshll.u32 %s1216, 4
          %s1221 = int_to_ptr.hbm [resolvable:$true] %s1220
          %1223 = dma.vmem_to_hbm [thread:$0]  %s1219, 32, %s1221, %s1206
        $region100: #{_bnn_forward.1} parent=95 // pred_fallthru
          _
      $region96: #{_bnn_forward.1} parent=5 // pred_fallthru
        _
      %p1224 = scmp.le.s32.totalorder 2, %s32
      // Predicated region
      $region101: #{_bnn_forward.1} parent=5 // pred_check
        %p1225 = pneg %p1224
      $region102: #{_bnn_forward.1} parent=5 // pred_check_branch
        %1227 = sbr.rel (%p1225) target = $region104
      $region103: #{_bnn_forward.1} parent=5 // pred_region
        %s1228 = ssub.s32 %s32, 2
        // Predicated region
        $region105: #{_bnn_forward.1} parent=103 // pred_check
          %p1229 = pneg %p490
        $region106: #{_bnn_forward.1} parent=103 // pred_check_branch
          %1231 = sbr.rel (%p1229) target = $region108
        $region107: #{_bnn_forward.1} parent=103 // pred_region
          %s1232 = sand.u32 %s475, 1
          %s1233 = scalar_lea.sflag [#allocation5], %s1232
          %s1234 = sand.u32 %s475, 1
          %s1235 = smul.addr %s1234, 2
          %s1236 = scalar_lea.vmem [#allocation4], %s1235
          %1238 = dma.done %s1233, 32
        $region108: #{_bnn_forward.1} parent=103 // pred_fallthru
          _
      $region104: #{_bnn_forward.1} parent=5 // pred_fallthru
        _
    $region6: #{_bnn_forward.1} parent=1 // loop_footer
      %s36 = sadd.s32 1, %s32
    $region7: #{_bnn_forward.1} parent=1 // loop_footer_branch
      %31 = sbr.rel target = $region3
    $region8: #{_bnn_forward.1} parent=1 // loop_exit
      _
    %1239 = vsyncpa [#allocation5], 1
    %s1240 = scalar_lea.sflag [#allocation5], 1
    %1241 = vsyncpa %s1240, 1

</llo_original>
